<compile_context>
chip_gen: v7x
topology: tpu7x:2x2x1
jax: 0.10.0
libtpu: 0.0.40
codegen_flags: <defaults>
</compile_context>

<pallas_src>
import jax
import jax.numpy as jnp
from jax import lax
from jax.experimental import pallas as pl
from jax.experimental.pallas import tpu as pltpu


HID = 20      # hidden width of each GCNConv (fixed by the module)
LANE = 128    # lane padding for feature / hidden / class dims


# ----------------------------------------------------------------------------
# Pallas kernel: whole NodeGCN forward for one GROUP of G graphs per grid step.
# ----------------------------------------------------------------------------
def nodegcn_kernel(adj_ref, x_ref, w_ref, b_ref, out_ref):
    # adj_ref : (1, GNP, GNP)  bf16  block-diagonal normalized adjacency
    # x_ref   : (1, GNP, 128)  bf16  stacked node features (lane-padded)
    # w_ref   : (768, 128)     bf16  packed weight slab (resident)
    # b_ref   : (8, 128)       f32   packed biases (resident)
    # out_ref : (1, GNP, 128)  f32   logits (lane-padded)
    adj = adj_ref[0]                                    # (GNP, GNP)  bf16
    x = x_ref[0]                                        # (GNP, 128)  bf16

    # Static, 128-row-aligned slices of the bf16 weight slab (no casts).
    w1 = w_ref[0 * LANE:1 * LANE, :]
    w2 = w_ref[1 * LANE:2 * LANE, :]
    w3 = w_ref[2 * LANE:3 * LANE, :]
    wl1 = w_ref[3 * LANE:4 * LANE, :]
    wl2 = w_ref[4 * LANE:5 * LANE, :]
    wl3 = w_ref[5 * LANE:6 * LANE, :]

    b1 = b_ref[0:1, :]                                  # (1, 128) f32
    b2 = b_ref[1:2, :]
    b3 = b_ref[2:3, :]
    bl = b_ref[3:4, :]

    def gcn_layer(h_bf16, w_bf16, b_f32):
        # GCNConv:  A_hat @ (h @ W) + b     (bf16 MXU, f32 accumulate)
        xw = jnp.dot(h_bf16, w_bf16, preferred_element_type=jnp.float32)
        agg = jnp.dot(adj, xw.astype(jnp.bfloat16),
                      preferred_element_type=jnp.float32) + b_f32
        # torch.nn.functional.normalize(p=2, dim=1): x / max(||x||_2, 1e-12)
        # == x * rsqrt(max(||x||^2, 1e-24))  (rsqrt runs on the EUP slot).
        ss = jnp.sum(agg * agg, axis=1, keepdims=True)
        normed = agg * lax.rsqrt(jnp.maximum(ss, 1e-24))
        return jnp.maximum(normed, 0.0)                 # ReLU, f32

    h1 = gcn_layer(x, w1, b1)                           # (GNP, 128) f32
    h1b = h1.astype(jnp.bfloat16)
    h2 = gcn_layer(h1b, w2, b2)
    h2b = h2.astype(jnp.bfloat16)
    h3 = gcn_layer(h2b, w3, b3)
    h3b = h3.astype(jnp.bfloat16)

    # Final linear on concat([h1, h2, h3], dim=1), implemented as a split
    # matmul (mathematically identical, avoids an in-kernel lane concatenate).
    out_ref[0] = (jnp.dot(h1b, wl1, preferred_element_type=jnp.float32)
                  + jnp.dot(h2b, wl2, preferred_element_type=jnp.float32)
                  + jnp.dot(h3b, wl3, preferred_element_type=jnp.float32)
                  + bl)


# ----------------------------------------------------------------------------
# Glue: dense normalized adjacency, matching torch_geometric gcn_norm with
# add_remaining_self_loops (ALL existing self-loops kept & summed, fill=1.0
# only for nodes without a self-loop).
# ----------------------------------------------------------------------------
def build_normalized_adjacency(edge_index, edge_weights, num_nodes):
    src = edge_index[0]
    dst = edge_index[1]
    is_loop = src == dst

    # Scatter-add every edge (self-loops included; duplicates sum).
    a = jnp.zeros((num_nodes, num_nodes), jnp.float32)
    a = a.at[dst, src].add(edge_weights.astype(jnp.float32))   # A[i,j] = w(j->i)

    # Remaining self-loops: add fill 1.0 only where no self-loop exists.
    has_loop = jnp.zeros((num_nodes,), jnp.bool_)
    loop_idx = jnp.where(is_loop, src, num_nodes)      # OOB index for non-loops
    has_loop = has_loop.at[loop_idx].set(True, mode="drop")
    fill = jnp.where(has_loop, 0.0, 1.0)
    a = a + fill[:, None] * jnp.eye(num_nodes, dtype=jnp.float32)

    deg = jnp.sum(a, axis=1)                           # in-degree (incl. self)
    dinv = jnp.where(deg > 0, lax.rsqrt(deg), 0.0)
    return (dinv[:, None] * a) * dinv[None, :]


# ----------------------------------------------------------------------------
# Packed parameters:
#   weight slab (768, 128) bf16:
#     rows [  0,128) W1   [128,256) W2   [256,384) W3
#     rows [384,512) WL[:20]  [512,640) WL[20:40]  [640,768) WL[40:60]
#   bias slab (8, 128) f32: rows 0..3 = b1, b2, b3, bl  (rows 4..7 zero).
# NOTE: all padding rows/columns MUST stay exactly zero -- the in-kernel
# row-L2 norm runs over all 128 lanes and relies on padded lanes being zero.
# ----------------------------------------------------------------------------
def pack_params(params, lane=LANE):
    w_slab = jnp.zeros((6 * lane, lane), jnp.float32)

    def put(s, r0, mat):
        mat = jnp.asarray(mat, jnp.float32)
        r, c = mat.shape
        return s.at[r0:r0 + r, 0:c].set(mat)

    w_slab = put(w_slab, 0 * lane, params["w1"])
    w_slab = put(w_slab, 1 * lane, params["w2"])
    w_slab = put(w_slab, 2 * lane, params["w3"])
    wl = jnp.asarray(params["wl"], jnp.float32)
    w_slab = put(w_slab, 3 * lane, wl[0 * HID:1 * HID])
    w_slab = put(w_slab, 4 * lane, wl[1 * HID:2 * HID])
    w_slab = put(w_slab, 5 * lane, wl[2 * HID:3 * HID])
    w_slab = w_slab.astype(jnp.bfloat16)

    b_slab = jnp.zeros((8, lane), jnp.float32)
    for i, key in enumerate(("b1", "b2", "b3", "bl")):
        b = jnp.asarray(params[key], jnp.float32).reshape(1, -1)
        b_slab = b_slab.at[i:i + 1, 0:b.shape[1]].set(b)
    return w_slab, b_slab


# ----------------------------------------------------------------------------
# Wrapper: accepts a single graph (N,F)/(2,E) or a batch (B,N,F)/(B,2,E).
# Whole forward (glue + kernel) is jitted so packing/scatter fuse with the
# pallas_call.
# ----------------------------------------------------------------------------
def _node_gcn_forward(x, edge_index, edge_weights, params):
    single = (x.ndim == 2)
    if single:
        x = x[None]
        edge_index = edge_index[None]
        edge_weights = None if edge_weights is None else edge_weights[None]
    if edge_weights is None:
        edge_weights = jnp.ones(
            (edge_index.shape[0], edge_index.shape[2]), jnp.float32)

    B, N, F = x.shape
    C = params["bl"].shape[-1]
    assert F <= LANE and HID <= LANE and C <= LANE
    NP = max(8, ((N + 7) // 8) * 8)                    # sublane-pad node dim

    # Group size: fill ~256 MXU rows per step (v6e/v7x height; 2 passes on
    # v5e's 128-high MXU) but keep >= 2 grid steps so v7x's two TensorCores
    # both get work.  Batch is zero-padded to a multiple of G.
    TARGET_ROWS = 256
    if B >= 2:
        G = max(1, min(TARGET_ROWS // NP, B // 2))
    else:
        G = 1
    G = min(G, B)
    num_groups = -(-B // G)                            # cdiv
    B_pad = num_groups * G
    GNP = G * NP

    # Dense normalized adjacency per graph (plain-JAX glue).
    adj = jax.vmap(build_normalized_adjacency, in_axes=(0, 0, None))(
        edge_index, edge_weights, N)                   # (B, N, N) f32

    # Pad node / batch dims; padded rows & graphs are all-zero so they cannot
    # leak into real nodes through the (zero) adjacency rows/columns.
    adj_p = jnp.zeros((B_pad, NP, NP), jnp.float32).at[:B, :N, :N].set(adj)
    x_p = jnp.zeros((B_pad, NP, LANE), jnp.float32).at[:B, :N, :F].set(x)

    # Block-diagonal bf16 adjacency per group: (num_groups, GNP, GNP).
    adj_g = adj_p.reshape(num_groups, G, NP, NP)
    eye_g = jnp.eye(G, dtype=jnp.float32)
    adj_bd = jnp.einsum("ij,gikl->gikjl", eye_g, adj_g)
    adj_bd = adj_bd.reshape(num_groups, GNP, GNP).astype(jnp.bfloat16)

    # Stacked node features per group: (num_groups, GNP, 128) bf16.
    x_g = x_p.reshape(num_groups, GNP, LANE).astype(jnp.bfloat16)

    w_slab, b_slab = pack_params(params)               # (768,128) bf16, (8,128) f32
    RW = w_slab.shape[0]

    out_g = pl.pallas_call(
        nodegcn_kernel,
        out_shape=jax.ShapeDtypeStruct((num_groups, GNP, LANE), jnp.float32),
        grid=(num_groups,),
        in_specs=[
            pl.BlockSpec((1, GNP, GNP), lambda g: (g, 0, 0)),    # adjacency
            pl.BlockSpec((1, GNP, LANE), lambda g: (g, 0, 0)),   # features
            pl.BlockSpec((RW, LANE), lambda g: (0, 0)),          # weights (resident)
            pl.BlockSpec((8, LANE), lambda g: (0, 0)),           # biases  (resident)
        ],
        out_specs=pl.BlockSpec((1, GNP, LANE), lambda g: (g, 0, 0)),
        compiler_params=pltpu.CompilerParams(
            dimension_semantics=("parallel",)),
    )(adj_bd, x_g, w_slab, b_slab)

    out = out_g.reshape(B_pad, NP, LANE)[:B, :N, :C]
    return out[0] if single else out


node_gcn_forward = jax.jit(_node_gcn_forward)


# ----------------------------------------------------------------------------
# Pure-JAX f32 reference (sanity check of the kernel semantics).
# ----------------------------------------------------------------------------
def node_gcn_reference(x, edge_index, edge_weights, params):
    adj = build_normalized_adjacency(edge_index, edge_weights, x.shape[0])

    def layer(h, w, b):
        agg = adj @ (h @ w) + b
        nrm = jnp.sqrt(jnp.sum(agg * agg, axis=1, keepdims=True))
        return jnp.maximum(agg / jnp.maximum(nrm, 1e-12), 0.0)

    h1 = layer(x, params["w1"], params["b1"])
    h2 = layer(h1, params["w2"], params["b2"])
    h3 = layer(h2, params["w3"], params["b3"])
    cat = jnp.concatenate([h1, h2, h3], axis=1)
    return cat @ params["wl"] + params["bl"]


if __name__ == "__main__":
    # Small shapes consistent with the module; B=16 graphs of 16 nodes so the
    # kernel runs with G=8 graphs per step (128 MXU rows) and 2 grid steps.
    B = 16
    NUM_NODES = 16
    NUM_FEATURES = 8
    NUM_CLASSES = 4

    key = jax.random.PRNGKey(0)
    (k_x, k_e, k_w1, k_b1, k_w2, k_b2, k_w3, k_b3, k_wl, k_bl) = \
        jax.random.split(key, 10)

    # Node features.
    x = jax.random.normal(k_x, (B, NUM_NODES, NUM_FEATURES), jnp.float32)

    # Graphs: a ring plus some random directed edges (per graph; random edges
    # may include self-loops, exercising the add_remaining_self_loops path).
    ring_src = jnp.arange(NUM_NODES, dtype=jnp.int32)
    ring_dst = (ring_src + 1) % NUM_NODES
    ring = jnp.stack([ring_src, ring_dst])                        # (2, 16)
    rnd = jax.random.randint(k_e, (B, 2, 32), 0, NUM_NODES, dtype=jnp.int32)
    edge_index = jnp.concatenate(
        [jnp.broadcast_to(ring[None], (B, 2, NUM_NODES)), rnd], axis=2)
    edge_weights = jnp.ones((B, edge_index.shape[-1]), jnp.float32)

    # Deterministic parameter init (shapes from NodeGCN.__init__).
    def glorot(k, shape):
        lim = jnp.sqrt(6.0 / (shape[0] + shape[1]))
        return jax.random.uniform(k, shape, jnp.float32, -lim, lim)

    params = {
        "w1": glorot(k_w1, (NUM_FEATURES, HID)),
        "b1": 0.01 * jax.random.normal(k_b1, (1, HID), jnp.float32),
        "w2": glorot(k_w2, (HID, HID)),
        "b2": 0.01 * jax.random.normal(k_b2, (1, HID), jnp.float32),
        "w3": glorot(k_w3, (HID, HID)),
        "b3": 0.01 * jax.random.normal(k_b3, (1, HID), jnp.float32),
        "wl": glorot(k_wl, (3 * HID, NUM_CLASSES)),
        "bl": 0.01 * jax.random.normal(k_bl, (1, NUM_CLASSES), jnp.float32),
    }

    # Batched forward through the Pallas kernel.
    out = node_gcn_forward(x, edge_index, edge_weights, params)
    out = jax.block_until_ready(out)

    ref = jax.vmap(node_gcn_reference, in_axes=(0, 0, 0, None))(
        x, edge_index, edge_weights, params)

    assert out.shape == (B, NUM_NODES, NUM_CLASSES)
    # Kernel uses bf16 matmul operands (f32 accumulate), so compare to the
    # f32 reference with a bf16-appropriate tolerance.
    max_err = jnp.max(jnp.abs(out - ref))
    assert jnp.allclose(out, ref, atol=2e-2, rtol=2e-2), \
        f"max abs err = {max_err}"

    # Single-graph path (exercises the (N,F)/(2,E) wrapper branch).
    out1 = node_gcn_forward(x[0], edge_index[0], edge_weights[0], params)
    out1 = jax.block_until_ready(out1)
    assert out1.shape == (NUM_NODES, NUM_CLASSES)
    assert jnp.allclose(out1, ref[0], atol=2e-2, rtol=2e-2)

    print("KERNEL_OK")
</pallas_src>

<mosaic_0001>
module attributes {stable_mosaic.version = 11 : i64} {
  func.func private @main(%arg0: i32) attributes {dimension_semantics = [#tpu.dimension_semantics<core_parallel>], iteration_bounds = array<i64: 2>, tpu.core_type = #tpu.core_type<sc_scalar_subcore>, window_params = []} {
    return
  }
}

module attributes {stable_mosaic.version = 11 : i64} {
  func.func private @main(%arg0: i32) attributes {dimension_semantics = [#tpu.dimension_semantics<core_parallel>], iteration_bounds = array<i64: 2>, tpu.core_type = #tpu.core_type<sc_scalar_subcore>, window_params = []} {
    return
  }
}

module attributes {stable_mosaic.version = 11 : i64} {
  func.func @nodegcn_kernel(%arg0: i32, %arg1: memref<1x128x128xbf16, #tpu.memory_space<vmem>>, %arg2: memref<1x128x128xbf16, #tpu.memory_space<vmem>>, %arg3: memref<768x128xbf16, #tpu.memory_space<vmem>>, %arg4: memref<8x128xf32, #tpu.memory_space<vmem>>, %arg5: memref<1x128x128xf32, #tpu.memory_space<vmem>>) attributes {dimension_semantics = [#tpu.dimension_semantics<parallel>], iteration_bounds = array<i64: 2>, scalar_prefetch = 0 : i64, scratch_operands = 0 : i64, tpu.core_type = #tpu.core_type<tc>, window_params = [{transform_indices = @transform_0, window_bounds = array<i64: 1, 128, 128>}, {transform_indices = @transform_1, window_bounds = array<i64: 1, 128, 128>}, {pipeline_mode = #tpu.pipeline_mode<synchronous>, transform_indices = @transform_2, window_bounds = array<i64: 768, 128>}, {pipeline_mode = #tpu.pipeline_mode<synchronous>, transform_indices = @transform_3, window_bounds = array<i64: 8, 128>}, {transform_indices = @transform_4, window_bounds = array<i64: 1, 128, 128>}]} {
    %c0 = arith.constant 0 : index
    %c0_0 = arith.constant 0 : index
    %c0_1 = arith.constant 0 : index
    %0 = vector.load %arg1[%c0, %c0_0, %c0_1] : memref<1x128x128xbf16, #tpu.memory_space<vmem>>, vector<1x128x128xbf16>
    %1 = vector.shape_cast %0 : vector<1x128x128xbf16> to vector<128x128xbf16>
    %c0_2 = arith.constant 0 : index
    %c0_3 = arith.constant 0 : index
    %c0_4 = arith.constant 0 : index
    %2 = vector.load %arg2[%c0_2, %c0_3, %c0_4] : memref<1x128x128xbf16, #tpu.memory_space<vmem>>, vector<1x128x128xbf16>
    %3 = vector.shape_cast %2 : vector<1x128x128xbf16> to vector<128x128xbf16>
    %c0_5 = arith.constant 0 : index
    %c0_6 = arith.constant 0 : index
    %4 = vector.load %arg3[%c0_5, %c0_6] : memref<768x128xbf16, #tpu.memory_space<vmem>>, vector<128x128xbf16>
    %c128 = arith.constant 128 : index
    %c0_7 = arith.constant 0 : index
    %5 = vector.load %arg3[%c128, %c0_7] : memref<768x128xbf16, #tpu.memory_space<vmem>>, vector<128x128xbf16>
    %c256 = arith.constant 256 : index
    %c0_8 = arith.constant 0 : index
    %6 = vector.load %arg3[%c256, %c0_8] : memref<768x128xbf16, #tpu.memory_space<vmem>>, vector<128x128xbf16>
    %c384 = arith.constant 384 : index
    %c0_9 = arith.constant 0 : index
    %7 = vector.load %arg3[%c384, %c0_9] : memref<768x128xbf16, #tpu.memory_space<vmem>>, vector<128x128xbf16>
    %c512 = arith.constant 512 : index
    %c0_10 = arith.constant 0 : index
    %8 = vector.load %arg3[%c512, %c0_10] : memref<768x128xbf16, #tpu.memory_space<vmem>>, vector<128x128xbf16>
    %c640 = arith.constant 640 : index
    %c0_11 = arith.constant 0 : index
    %9 = vector.load %arg3[%c640, %c0_11] : memref<768x128xbf16, #tpu.memory_space<vmem>>, vector<128x128xbf16>
    %c0_12 = arith.constant 0 : index
    %c0_13 = arith.constant 0 : index
    %10 = vector.load %arg4[%c0_12, %c0_13] : memref<8x128xf32, #tpu.memory_space<vmem>>, vector<1x128xf32>
    %c1 = arith.constant 1 : index
    %c0_14 = arith.constant 0 : index
    %11 = vector.load %arg4[%c1, %c0_14] : memref<8x128xf32, #tpu.memory_space<vmem>>, vector<1x128xf32>
    %c2 = arith.constant 2 : index
    %c0_15 = arith.constant 0 : index
    %12 = vector.load %arg4[%c2, %c0_15] : memref<8x128xf32, #tpu.memory_space<vmem>>, vector<1x128xf32>
    %c3 = arith.constant 3 : index
    %c0_16 = arith.constant 0 : index
    %13 = vector.load %arg4[%c3, %c0_16] : memref<8x128xf32, #tpu.memory_space<vmem>>, vector<1x128xf32>
    %cst = arith.constant dense<0.000000e+00> : vector<128x128xf32>
    %14 = tpu.matmul %3, %4, %cst {dimension_numbers = #tpu.dot_dimension_numbers<[1], [0], [0], [1], [0, 0, 1, 1], [], []>} : vector<128x128xbf16>, vector<128x128xbf16>, vector<128x128xf32> -> vector<128x128xf32>
    %15 = arith.truncf %14 : vector<128x128xf32> to vector<128x128xbf16>
    %cst_17 = arith.constant dense<0.000000e+00> : vector<128x128xf32>
    %16 = tpu.matmul %1, %15, %cst_17 {dimension_numbers = #tpu.dot_dimension_numbers<[1], [0], [0], [1], [0, 0, 1, 1], [], []>} : vector<128x128xbf16>, vector<128x128xbf16>, vector<128x128xf32> -> vector<128x128xf32>
    %17 = vector.broadcast %10 : vector<1x128xf32> to vector<128x128xf32>
    %18 = arith.addf %16, %17 : vector<128x128xf32>
    %19 = arith.mulf %18, %18 : vector<128x128xf32>
    %cst_18 = arith.constant dense<0.000000e+00> : vector<128xf32>
    %20 = vector.multi_reduction <add>, %19, %cst_18 [1] : vector<128x128xf32> to vector<128xf32>
    %21 = vector.shape_cast %20 : vector<128xf32> to vector<128x1xf32>
    %cst_19 = arith.constant 1.000000e-24 : f32
    %22 = vector.broadcast %cst_19 : f32 to vector<128x1xf32>
    %23 = arith.maximumf %21, %22 : vector<128x1xf32>
    %24 = math.rsqrt %23 : vector<128x1xf32>
    %25 = vector.broadcast %24 : vector<128x1xf32> to vector<128x128xf32>
    %26 = arith.mulf %18, %25 : vector<128x128xf32>
    %cst_20 = arith.constant 0.000000e+00 : f32
    %27 = vector.broadcast %cst_20 : f32 to vector<128x128xf32>
    %28 = arith.maximumf %26, %27 : vector<128x128xf32>
    %29 = arith.truncf %28 : vector<128x128xf32> to vector<128x128xbf16>
    %cst_21 = arith.constant dense<0.000000e+00> : vector<128x128xf32>
    %30 = tpu.matmul %29, %5, %cst_21 {dimension_numbers = #tpu.dot_dimension_numbers<[1], [0], [0], [1], [0, 0, 1, 1], [], []>} : vector<128x128xbf16>, vector<128x128xbf16>, vector<128x128xf32> -> vector<128x128xf32>
    %31 = arith.truncf %30 : vector<128x128xf32> to vector<128x128xbf16>
    %cst_22 = arith.constant dense<0.000000e+00> : vector<128x128xf32>
    %32 = tpu.matmul %1, %31, %cst_22 {dimension_numbers = #tpu.dot_dimension_numbers<[1], [0], [0], [1], [0, 0, 1, 1], [], []>} : vector<128x128xbf16>, vector<128x128xbf16>, vector<128x128xf32> -> vector<128x128xf32>
    %33 = vector.broadcast %11 : vector<1x128xf32> to vector<128x128xf32>
    %34 = arith.addf %32, %33 : vector<128x128xf32>
    %35 = arith.mulf %34, %34 : vector<128x128xf32>
    %cst_23 = arith.constant dense<0.000000e+00> : vector<128xf32>
    %36 = vector.multi_reduction <add>, %35, %cst_23 [1] : vector<128x128xf32> to vector<128xf32>
    %37 = vector.shape_cast %36 : vector<128xf32> to vector<128x1xf32>
    %cst_24 = arith.constant 1.000000e-24 : f32
    %38 = vector.broadcast %cst_24 : f32 to vector<128x1xf32>
    %39 = arith.maximumf %37, %38 : vector<128x1xf32>
    %40 = math.rsqrt %39 : vector<128x1xf32>
    %41 = vector.broadcast %40 : vector<128x1xf32> to vector<128x128xf32>
    %42 = arith.mulf %34, %41 : vector<128x128xf32>
    %cst_25 = arith.constant 0.000000e+00 : f32
    %43 = vector.broadcast %cst_25 : f32 to vector<128x128xf32>
    %44 = arith.maximumf %42, %43 : vector<128x128xf32>
    %45 = arith.truncf %44 : vector<128x128xf32> to vector<128x128xbf16>
    %cst_26 = arith.constant dense<0.000000e+00> : vector<128x128xf32>
    %46 = tpu.matmul %45, %6, %cst_26 {dimension_numbers = #tpu.dot_dimension_numbers<[1], [0], [0], [1], [0, 0, 1, 1], [], []>} : vector<128x128xbf16>, vector<128x128xbf16>, vector<128x128xf32> -> vector<128x128xf32>
    %47 = arith.truncf %46 : vector<128x128xf32> to vector<128x128xbf16>
    %cst_27 = arith.constant dense<0.000000e+00> : vector<128x128xf32>
    %48 = tpu.matmul %1, %47, %cst_27 {dimension_numbers = #tpu.dot_dimension_numbers<[1], [0], [0], [1], [0, 0, 1, 1], [], []>} : vector<128x128xbf16>, vector<128x128xbf16>, vector<128x128xf32> -> vector<128x128xf32>
    %49 = vector.broadcast %12 : vector<1x128xf32> to vector<128x128xf32>
    %50 = arith.addf %48, %49 : vector<128x128xf32>
    %51 = arith.mulf %50, %50 : vector<128x128xf32>
    %cst_28 = arith.constant dense<0.000000e+00> : vector<128xf32>
    %52 = vector.multi_reduction <add>, %51, %cst_28 [1] : vector<128x128xf32> to vector<128xf32>
    %53 = vector.shape_cast %52 : vector<128xf32> to vector<128x1xf32>
    %cst_29 = arith.constant 1.000000e-24 : f32
    %54 = vector.broadcast %cst_29 : f32 to vector<128x1xf32>
    %55 = arith.maximumf %53, %54 : vector<128x1xf32>
    %56 = math.rsqrt %55 : vector<128x1xf32>
    %57 = vector.broadcast %56 : vector<128x1xf32> to vector<128x128xf32>
    %58 = arith.mulf %50, %57 : vector<128x128xf32>
    %cst_30 = arith.constant 0.000000e+00 : f32
    %59 = vector.broadcast %cst_30 : f32 to vector<128x128xf32>
    %60 = arith.maximumf %58, %59 : vector<128x128xf32>
    %61 = arith.truncf %60 : vector<128x128xf32> to vector<128x128xbf16>
    %cst_31 = arith.constant dense<0.000000e+00> : vector<128x128xf32>
    %62 = tpu.matmul %29, %7, %cst_31 {dimension_numbers = #tpu.dot_dimension_numbers<[1], [0], [0], [1], [0, 0, 1, 1], [], []>} : vector<128x128xbf16>, vector<128x128xbf16>, vector<128x128xf32> -> vector<128x128xf32>
    %cst_32 = arith.constant dense<0.000000e+00> : vector<128x128xf32>
    %63 = tpu.matmul %45, %8, %cst_32 {dimension_numbers = #tpu.dot_dimension_numbers<[1], [0], [0], [1], [0, 0, 1, 1], [], []>} : vector<128x128xbf16>, vector<128x128xbf16>, vector<128x128xf32> -> vector<128x128xf32>
    %64 = arith.addf %62, %63 : vector<128x128xf32>
    %cst_33 = arith.constant dense<0.000000e+00> : vector<128x128xf32>
    %65 = tpu.matmul %61, %9, %cst_33 {dimension_numbers = #tpu.dot_dimension_numbers<[1], [0], [0], [1], [0, 0, 1, 1], [], []>} : vector<128x128xbf16>, vector<128x128xbf16>, vector<128x128xf32> -> vector<128x128xf32>
    %66 = arith.addf %64, %65 : vector<128x128xf32>
    %67 = vector.broadcast %13 : vector<1x128xf32> to vector<128x128xf32>
    %68 = arith.addf %66, %67 : vector<128x128xf32>
    %c0_34 = arith.constant 0 : index
    %c0_35 = arith.constant 0 : index
    %c0_36 = arith.constant 0 : index
    %69 = vector.load %arg5[%c0_34, %c0_35, %c0_36] : memref<1x128x128xf32, #tpu.memory_space<vmem>>, vector<1x128x128xf32>
    %70 = vector.shape_cast %69 : vector<1x128x128xf32> to vector<128x128xf32>
    %71 = vector.shape_cast %68 : vector<128x128xf32> to vector<1x128x128xf32>
    tpu.vector_store %arg5[%c0_34, %c0_35, %c0_36], %71 {strides = array<i32>} : memref<1x128x128xf32, #tpu.memory_space<vmem>>, vector<1x128x128xf32>,
    return
  }
  func.func @transform_0(%arg0: i32) -> (i32, i32, i32) {
    %c0_i32 = arith.constant 0 : i32
    %c0_i32_0 = arith.constant 0 : i32
    %c0_i32_1 = arith.constant 0 : i32
    return %arg0, %c0_i32, %c0_i32_0 : i32, i32, i32
  }
  func.func @transform_1(%arg0: i32) -> (i32, i32, i32) {
    %c0_i32 = arith.constant 0 : i32
    %c0_i32_0 = arith.constant 0 : i32
    %c0_i32_1 = arith.constant 0 : i32
    return %arg0, %c0_i32, %c0_i32_0 : i32, i32, i32
  }
  func.func @transform_2(%arg0: i32) -> (i32, i32) {
    %c0_i32 = arith.constant 0 : i32
    %c0_i32_0 = arith.constant 0 : i32
    %c0_i32_1 = arith.constant 0 : i32
    return %c0_i32, %c0_i32_0 : i32, i32
  }
  func.func @transform_3(%arg0: i32) -> (i32, i32) {
    %c0_i32 = arith.constant 0 : i32
    %c0_i32_0 = arith.constant 0 : i32
    %c0_i32_1 = arith.constant 0 : i32
    return %c0_i32, %c0_i32_0 : i32, i32
  }
  func.func @transform_4(%arg0: i32) -> (i32, i32, i32) {
    %c0_i32 = arith.constant 0 : i32
    %c0_i32_0 = arith.constant 0 : i32
    %c0_i32_1 = arith.constant 0 : i32
    return %arg0, %c0_i32, %c0_i32_0 : i32, i32, i32
  }
}

</mosaic_0001>

<llo_original>
// kernel: _node_gcn_forward.1
$region0: #{_node_gcn_forward.1}
  #allocation0 [shape = 'u32[]', space=smem, size = 0x4, offset = 0x4, fixed_abs, tag = 'smem constant byte address 0x4 - core index']
  #allocation1 [shape = 'u32[144,128]{1,0:T(1,128)}', space=vmem, size = 0x12000, scoped, tag = 'internal scratch']
  %s0 = inlined_call_operand.vmem [shape: bf16[2,128,128], index: 0, kind: input, shape index: {}]
  %s1 = inlined_call_operand.vmem [shape: bf16[2,128,128], index: 1, kind: input, shape index: {}]
  %s2 = inlined_call_operand.vmem [shape: bf16[768,128], index: 2, kind: input, shape index: {}]
  %s3 = inlined_call_operand.vmem [shape: f32[8,128], index: 3, kind: input, shape index: {}]
  %s4 = inlined_call_operand.vmem [shape: f32[2,128,128], index: 4, kind: output, shape index: {}]
  %s5 = sld [smem:[#allocation0]]
  $region49: #{_node_gcn_forward.1} parent=0
    _
  %s7 = ssub.s32 1, %s5
  %s8 = scalar_select 0, %s7, %s5
  loop: start=0, step=1, limit=4
  $region2: #{_node_gcn_forward.1} parent=0 // loop_pre_header
    _
  $region3: #{_node_gcn_forward.1} parent=0 // loop_header
    %s10 = sphi 0, %s14
    %p11 = scmp.ge.s32.totalorder %s10, 4
    %s20 = sphi 0, %s22
    %s23 = sphi 0, %s20
    %s24 = sphi 0, %s23
    %s40 = sphi 0, %s24
    %s46 = sphi 0, %s48
    %s49 = sphi 0, %s46
    %s50 = sphi 0, %s49
    %s66 = sphi 0, %s50
    %s70 = sphi 0, %s70
    %s72 = sphi 0, %s70
    %s73 = sphi 0, %s72
    %s87 = sphi 0, %s73
    %s91 = sphi 0, %s91
    %s93 = sphi 0, %s91
    %s94 = sphi 0, %s93
    %s108 = sphi 0, %s94
    %s114 = sphi 0, %s116
    %s117 = sphi 0, %s114
    %s118 = sphi 0, %s117
    %s134 = sphi 0, %s118
  $region4: #{_node_gcn_forward.1} parent=0 // loop_header_branch
    %13 = sbr.rel (%p11) target = $region8
  $region5: #{_node_gcn_forward.1} parent=0 // loop_body
    %s15 = ssub.s32 %s10, 1
    %s16 = ssub.s32 %s10, 2
    %s17 = sadd.s32 %s10, 1
    %s18 = ssub.s32 %s10, %s17
    %p19 = scmp.eq.s32.totalorder %s18, 0
    %s21 = sadd.s32 %s20, 1
    %s22 = scalar_select %p19, %s20, %s21
    %p25 = pneg %p19
    %p26 = scmp.eq.s32.totalorder %s10, 1
    %p27 = por %p25, %p26
    %p28 = scmp.ne.s32.totalorder %s20, %s23
    %p29 = scmp.eq.s32.totalorder %s10, 0
    %p30 = por %p28, %p29
    %p31 = scmp.ne.s32.totalorder %s20, %s23
    %p32 = scmp.eq.s32.totalorder %s15, 1
    %p33 = por %p31, %p32
    %p34 = scmp.ne.s32.totalorder %s23, %s24
    %p35 = scmp.eq.s32.totalorder %s15, 0
    %p36 = por %p34, %p35
    %p37 = scmp.ne.s32.totalorder %s23, %s24
    %p38 = scmp.eq.s32.totalorder %s16, 1
    %p39 = por %p37, %p38
    %p41 = scmp.ne.s32.totalorder %s24, %s40
    %p42 = scmp.eq.s32.totalorder %s16, 0
    %p43 = por %p41, %p42
    %s44 = ssub.s32 %s10, %s17
    %p45 = scmp.eq.s32.totalorder %s44, 0
    %s47 = sadd.s32 %s46, 1
    %s48 = scalar_select %p45, %s46, %s47
    %p51 = pneg %p45
    %p52 = scmp.eq.s32.totalorder %s10, 1
    %p53 = por %p51, %p52
    %p54 = scmp.ne.s32.totalorder %s46, %s49
    %p55 = scmp.eq.s32.totalorder %s10, 0
    %p56 = por %p54, %p55
    %p57 = scmp.ne.s32.totalorder %s46, %s49
    %p58 = scmp.eq.s32.totalorder %s15, 1
    %p59 = por %p57, %p58
    %p60 = scmp.ne.s32.totalorder %s49, %s50
    %p61 = scmp.eq.s32.totalorder %s15, 0
    %p62 = por %p60, %p61
    %p63 = scmp.ne.s32.totalorder %s49, %s50
    %p64 = scmp.eq.s32.totalorder %s16, 1
    %p65 = por %p63, %p64
    %p67 = scmp.ne.s32.totalorder %s50, %s66
    %p68 = scmp.eq.s32.totalorder %s16, 0
    %p69 = por %p67, %p68
    %s71 = sadd.s32 %s70, 1
    %p74 = scmp.eq.s32.totalorder %s10, 1
    %p75 = scmp.ne.s32.totalorder %s70, %s72
    %p76 = scmp.eq.s32.totalorder %s10, 0
    %p77 = por %p75, %p76
    %p78 = scmp.ne.s32.totalorder %s70, %s72
    %p79 = scmp.eq.s32.totalorder %s15, 1
    %p80 = por %p78, %p79
    %p81 = scmp.ne.s32.totalorder %s72, %s73
    %p82 = scmp.eq.s32.totalorder %s15, 0
    %p83 = por %p81, %p82
    %p84 = scmp.ne.s32.totalorder %s72, %s73
    %p85 = scmp.eq.s32.totalorder %s16, 1
    %p86 = por %p84, %p85
    %p88 = scmp.ne.s32.totalorder %s73, %s87
    %p89 = scmp.eq.s32.totalorder %s16, 0
    %p90 = por %p88, %p89
    %s92 = sadd.s32 %s91, 1
    %p95 = scmp.eq.s32.totalorder %s10, 1
    %p96 = scmp.ne.s32.totalorder %s91, %s93
    %p97 = scmp.eq.s32.totalorder %s10, 0
    %p98 = por %p96, %p97
    %p99 = scmp.ne.s32.totalorder %s91, %s93
    %p100 = scmp.eq.s32.totalorder %s15, 1
    %p101 = por %p99, %p100
    %p102 = scmp.ne.s32.totalorder %s93, %s94
    %p103 = scmp.eq.s32.totalorder %s15, 0
    %p104 = por %p102, %p103
    %p105 = scmp.ne.s32.totalorder %s93, %s94
    %p106 = scmp.eq.s32.totalorder %s16, 1
    %p107 = por %p105, %p106
    %p109 = scmp.ne.s32.totalorder %s94, %s108
    %p110 = scmp.eq.s32.totalorder %s16, 0
    %p111 = por %p109, %p110
    %s112 = ssub.s32 %s10, %s17
    %p113 = scmp.eq.s32.totalorder %s112, 0
    %s115 = sadd.s32 %s114, 1
    %s116 = scalar_select %p113, %s114, %s115
    %p119 = pneg %p113
    %p120 = scmp.eq.s32.totalorder %s10, 1
    %p121 = por %p119, %p120
    %p122 = scmp.ne.s32.totalorder %s114, %s117
    %p123 = scmp.eq.s32.totalorder %s10, 0
    %p124 = por %p122, %p123
    %p125 = scmp.ne.s32.totalorder %s114, %s117
    %p126 = scmp.eq.s32.totalorder %s15, 1
    %p127 = por %p125, %p126
    %p128 = scmp.ne.s32.totalorder %s117, %s118
    %p129 = scmp.eq.s32.totalorder %s15, 0
    %p130 = por %p128, %p129
    %p131 = scmp.ne.s32.totalorder %s117, %s118
    %p132 = scmp.eq.s32.totalorder %s16, 1
    %p133 = por %p131, %p132
    %p135 = scmp.ne.s32.totalorder %s118, %s134
    %p136 = scmp.eq.s32.totalorder %s16, 0
    %p137 = por %p135, %p136
    %p138 = scmp.le.s32.totalorder 1, %s10
    %p139 = scmp.lt.s32.totalorder %s10, 3
    %p140 = pnand %p138, %p139
    %p141 = pneg %p140
    // Predicated region
    $region9: #{_node_gcn_forward.1} parent=5 // pred_check
      _
    $region10: #{_node_gcn_forward.1} parent=5 // pred_check_branch
      %143 = sbr.rel (%p140) target = $region12
    $region11: #{_node_gcn_forward.1} parent=5 // pred_region
      %s144 = ssub.s32 %s10, 1
      // Predicated region
      $region13: #{_node_gcn_forward.1} parent=11 // pred_check
        %p145 = pneg %p83
      $region14: #{_node_gcn_forward.1} parent=11 // pred_check_branch
        %147 = sbr.rel (%p145) target = $region16
      $region15: #{_node_gcn_forward.1} parent=11 // pred_region
        _
      $region16: #{_node_gcn_forward.1} parent=11 // pred_fallthru
        _
      // Predicated region
      $region17: #{_node_gcn_forward.1} parent=11 // pred_check
        %p148 = pneg %p104
      $region18: #{_node_gcn_forward.1} parent=11 // pred_check_branch
        %150 = sbr.rel (%p148) target = $region20
      $region19: #{_node_gcn_forward.1} parent=11 // pred_region
        _
      $region20: #{_node_gcn_forward.1} parent=11 // pred_fallthru
        _
    $region12: #{_node_gcn_forward.1} parent=5 // pred_fallthru
      _
    %p151 = scmp.lt.s32.totalorder %s10, 2
    // Predicated region
    $region21: #{_node_gcn_forward.1} parent=5 // pred_check
      %p152 = pneg %p151
    $region22: #{_node_gcn_forward.1} parent=5 // pred_check_branch
      %154 = sbr.rel (%p152) target = $region24
    $region23: #{_node_gcn_forward.1} parent=5 // pred_region
      // Predicated region
      $region25: #{_node_gcn_forward.1} parent=23 // pred_check
        %p155 = pneg %p30
      $region26: #{_node_gcn_forward.1} parent=23 // pred_check_branch
        %157 = sbr.rel (%p155) target = $region28
      $region27: #{_node_gcn_forward.1} parent=23 // pred_region
        %p158 = scmp.lt.s32.totalorder %s10, 1
        %s159 = scalar_select %p158, %s10, 1
        %s160 = smul.addr %s159, 16
        %s161 = smul.addr %s160, 4
        %s162 = scalar_lea.vmem %s0, %s161
      $region28: #{_node_gcn_forward.1} parent=23 // pred_fallthru
        _
      // Predicated region
      $region29: #{_node_gcn_forward.1} parent=23 // pred_check
        %p163 = pneg %p56
      $region30: #{_node_gcn_forward.1} parent=23 // pred_check_branch
        %165 = sbr.rel (%p163) target = $region32
      $region31: #{_node_gcn_forward.1} parent=23 // pred_region
        %p166 = scmp.lt.s32.totalorder %s10, 1
        %s167 = scalar_select %p166, %s10, 1
        %s168 = smul.addr %s167, 16
        %s169 = smul.addr %s168, 4
        %s170 = scalar_lea.vmem %s1, %s169
      $region32: #{_node_gcn_forward.1} parent=23 // pred_fallthru
        _
    $region24: #{_node_gcn_forward.1} parent=5 // pred_fallthru
      _
    %p171 = scmp.le.s32.totalorder 1, %s10
    %p172 = scmp.lt.s32.totalorder %s10, 3
    %p173 = pnand %p171, %p172
    %p174 = pneg %p173
    // Predicated region
    $region33: #{_node_gcn_forward.1} parent=5 // pred_check
      _
    $region34: #{_node_gcn_forward.1} parent=5 // pred_check_branch
      %176 = sbr.rel (%p173) target = $region36
    $region35: #{_node_gcn_forward.1} parent=5 // pred_region
      %s177 = ssub.s32 %s10, 1
      %p178 = scmp.lt.s32.totalorder %s15, 1
      %s179 = scalar_select %p178, %s15, 1
      %s180 = smul.addr %s179, 16
      %s181 = smul.addr %s180, 4
      %s182 = scalar_lea.vmem %s0, %s181
      %p183 = pneg %p36
      %p184 = pneg %p33
      %p185 = scmp.lt.s32.totalorder %s15, 1
      %s186 = scalar_select %p185, %s15, 1
      %s187 = smul.addr %s186, 16
      %s188 = smul.addr %s187, 4
      %s189 = scalar_lea.vmem %s1, %s188
      %p190 = pneg %p62
      %p191 = pneg %p59
      %p192 = pneg %p83
      %p193 = pneg %p80
      %p194 = pneg %p104
      %p195 = pneg %p101
      %p196 = pneg %p130
      %p197 = pneg %p127
      %p198 = scmp.lt.s32.totalorder %s15, 1
      %s199 = scalar_select %p198, %s15, 1
      %s200 = smul.addr %s199, 16
      %s201 = smul.addr %s200, 8
      %s202 = scalar_lea.vmem %s4, %s201
      %p203 = scmp.lt.s32.totalorder %s15, 1
      %s204 = scalar_select %p203, %s15, 1
      %s205 = smul.addr %s204, 16
      %s206 = smul.addr %s205, 4
      %s207 = scalar_lea.vmem %s0, %s206
      %p208 = scmp.lt.s32.totalorder %s15, 1
      %s209 = scalar_select %p208, %s15, 1
      %s210 = smul.addr %s209, 16
      %s211 = smul.addr %s210, 4
      %s212 = scalar_lea.vmem %s1, %s211
      %p213 = scmp.lt.s32.totalorder %s15, 1
      %s214 = scalar_select %p213, %s15, 1
      %s215 = smul.addr %s214, 16
      %s216 = smul.addr %s215, 8
      %s217 = scalar_lea.vmem %s4, %s216
      %v219 = vld [vmem:[%s207] sm:$0xf]
      %v220 = vld [vmem:[%s207 + $0x4] sm:$0xf]
      %v221 = vld [vmem:[%s207 + $0x8] sm:$0xf]
      %v222 = vld [vmem:[%s207 + $0xc] sm:$0xf]
      %v223 = vld [vmem:[%s207 + $0x10] sm:$0xf]
      %v224 = vld [vmem:[%s207 + $0x14] sm:$0xf]
      %v225 = vld [vmem:[%s207 + $0x18] sm:$0xf]
      %v226 = vld [vmem:[%s207 + $0x1c] sm:$0xf]
      %v227 = vld [vmem:[%s207 + $0x20] sm:$0xf]
      %v228 = vld [vmem:[%s207 + $0x24] sm:$0xf]
      %v229 = vld [vmem:[%s207 + $0x28] sm:$0xf]
      %v230 = vld [vmem:[%s207 + $0x2c] sm:$0xf]
      %v231 = vld [vmem:[%s207 + $0x30] sm:$0xf]
      %v232 = vld [vmem:[%s207 + $0x34] sm:$0xf]
      %v233 = vld [vmem:[%s207 + $0x38] sm:$0xf]
      %v234 = vld [vmem:[%s207 + $0x3c] sm:$0xf]
      %v235 = vld [vmem:[%s212] sm:$0xf]
      %v236 = vld [vmem:[%s212 + $0x4] sm:$0xf]
      %v237 = vld [vmem:[%s212 + $0x8] sm:$0xf]
      %v238 = vld [vmem:[%s212 + $0xc] sm:$0xf]
      %v239 = vld [vmem:[%s212 + $0x10] sm:$0xf]
      %v240 = vld [vmem:[%s212 + $0x14] sm:$0xf]
      %v241 = vld [vmem:[%s212 + $0x18] sm:$0xf]
      %v242 = vld [vmem:[%s212 + $0x1c] sm:$0xf]
      %v243 = vld [vmem:[%s212 + $0x20] sm:$0xf]
      %v244 = vld [vmem:[%s212 + $0x24] sm:$0xf]
      %v245 = vld [vmem:[%s212 + $0x28] sm:$0xf]
      %v246 = vld [vmem:[%s212 + $0x2c] sm:$0xf]
      %v247 = vld [vmem:[%s212 + $0x30] sm:$0xf]
      %v248 = vld [vmem:[%s212 + $0x34] sm:$0xf]
      %v249 = vld [vmem:[%s212 + $0x38] sm:$0xf]
      %v250 = vld [vmem:[%s212 + $0x3c] sm:$0xf]
      %v251 = vld [vmem:[%s2] sm:$0xf]
      %v252 = vld [vmem:[%s2 + $0x4] sm:$0xf]
      %v253 = vld [vmem:[%s2 + $0x8] sm:$0xf]
      %v254 = vld [vmem:[%s2 + $0xc] sm:$0xf]
      %v255 = vld [vmem:[%s2 + $0x10] sm:$0xf]
      %v256 = vld [vmem:[%s2 + $0x14] sm:$0xf]
      %v257 = vld [vmem:[%s2 + $0x18] sm:$0xf]
      %v258 = vld [vmem:[%s2 + $0x1c] sm:$0xf]
      %v259 = vld [vmem:[%s2 + $0x20] sm:$0xf]
      %v260 = vld [vmem:[%s2 + $0x24] sm:$0xf]
      %v261 = vld [vmem:[%s2 + $0x28] sm:$0xf]
      %v262 = vld [vmem:[%s2 + $0x2c] sm:$0xf]
      %v263 = vld [vmem:[%s2 + $0x30] sm:$0xf]
      %v264 = vld [vmem:[%s2 + $0x34] sm:$0xf]
      %v265 = vld [vmem:[%s2 + $0x38] sm:$0xf]
      %v266 = vld [vmem:[%s2 + $0x3c] sm:$0xf]
      %v267 = vld [vmem:[%s2 + $0x40] sm:$0xf]
      %v268 = vld [vmem:[%s2 + $0x44] sm:$0xf]
      %v269 = vld [vmem:[%s2 + $0x48] sm:$0xf]
      %v270 = vld [vmem:[%s2 + $0x4c] sm:$0xf]
      %v271 = vld [vmem:[%s2 + $0x50] sm:$0xf]
      %v272 = vld [vmem:[%s2 + $0x54] sm:$0xf]
      %v273 = vld [vmem:[%s2 + $0x58] sm:$0xf]
      %v274 = vld [vmem:[%s2 + $0x5c] sm:$0xf]
      %v275 = vld [vmem:[%s2 + $0x60] sm:$0xf]
      %v276 = vld [vmem:[%s2 + $0x64] sm:$0xf]
      %v277 = vld [vmem:[%s2 + $0x68] sm:$0xf]
      %v278 = vld [vmem:[%s2 + $0x6c] sm:$0xf]
      %v279 = vld [vmem:[%s2 + $0x70] sm:$0xf]
      %v280 = vld [vmem:[%s2 + $0x74] sm:$0xf]
      %v281 = vld [vmem:[%s2 + $0x78] sm:$0xf]
      %v282 = vld [vmem:[%s2 + $0x7c] sm:$0xf]
      %v283 = vld [vmem:[%s2 + $0x80] sm:$0xf]
      %v284 = vld [vmem:[%s2 + $0x84] sm:$0xf]
      %v285 = vld [vmem:[%s2 + $0x88] sm:$0xf]
      %v286 = vld [vmem:[%s2 + $0x8c] sm:$0xf]
      %v287 = vld [vmem:[%s2 + $0x90] sm:$0xf]
      %v288 = vld [vmem:[%s2 + $0x94] sm:$0xf]
      %v289 = vld [vmem:[%s2 + $0x98] sm:$0xf]
      %v290 = vld [vmem:[%s2 + $0x9c] sm:$0xf]
      %v291 = vld [vmem:[%s2 + $0xa0] sm:$0xf]
      %v292 = vld [vmem:[%s2 + $0xa4] sm:$0xf]
      %v293 = vld [vmem:[%s2 + $0xa8] sm:$0xf]
      %v294 = vld [vmem:[%s2 + $0xac] sm:$0xf]
      %v295 = vld [vmem:[%s2 + $0xb0] sm:$0xf]
      %v296 = vld [vmem:[%s2 + $0xb4] sm:$0xf]
      %v297 = vld [vmem:[%s2 + $0xb8] sm:$0xf]
      %v298 = vld [vmem:[%s2 + $0xbc] sm:$0xf]
      %v299 = vld [vmem:[%s2 + $0xc0] sm:$0xf]
      %v300 = vld [vmem:[%s2 + $0xc4] sm:$0xf]
      %v301 = vld [vmem:[%s2 + $0xc8] sm:$0xf]
      %v302 = vld [vmem:[%s2 + $0xcc] sm:$0xf]
      %v303 = vld [vmem:[%s2 + $0xd0] sm:$0xf]
      %v304 = vld [vmem:[%s2 + $0xd4] sm:$0xf]
      %v305 = vld [vmem:[%s2 + $0xd8] sm:$0xf]
      %v306 = vld [vmem:[%s2 + $0xdc] sm:$0xf]
      %v307 = vld [vmem:[%s2 + $0xe0] sm:$0xf]
      %v308 = vld [vmem:[%s2 + $0xe4] sm:$0xf]
      %v309 = vld [vmem:[%s2 + $0xe8] sm:$0xf]
      %v310 = vld [vmem:[%s2 + $0xec] sm:$0xf]
      %v311 = vld [vmem:[%s2 + $0xf0] sm:$0xf]
      %v312 = vld [vmem:[%s2 + $0xf4] sm:$0xf]
      %v313 = vld [vmem:[%s2 + $0xf8] sm:$0xf]
      %v314 = vld [vmem:[%s2 + $0xfc] sm:$0xf]
      %v315 = vld [vmem:[%s2 + $0x100] sm:$0xf]
      %v316 = vld [vmem:[%s2 + $0x104] sm:$0xf]
      %v317 = vld [vmem:[%s2 + $0x108] sm:$0xf]
      %v318 = vld [vmem:[%s2 + $0x10c] sm:$0xf]
      %v319 = vld [vmem:[%s2 + $0x110] sm:$0xf]
      %v320 = vld [vmem:[%s2 + $0x114] sm:$0xf]
      %v321 = vld [vmem:[%s2 + $0x118] sm:$0xf]
      %v322 = vld [vmem:[%s2 + $0x11c] sm:$0xf]
      %v323 = vld [vmem:[%s2 + $0x120] sm:$0xf]
      %v324 = vld [vmem:[%s2 + $0x124] sm:$0xf]
      %v325 = vld [vmem:[%s2 + $0x128] sm:$0xf]
      %v326 = vld [vmem:[%s2 + $0x12c] sm:$0xf]
      %v327 = vld [vmem:[%s2 + $0x130] sm:$0xf]
      %v328 = vld [vmem:[%s2 + $0x134] sm:$0xf]
      %v329 = vld [vmem:[%s2 + $0x138] sm:$0xf]
      %v330 = vld [vmem:[%s2 + $0x13c] sm:$0xf]
      %v331 = vld [vmem:[%s2 + $0x140] sm:$0xf]
      %v332 = vld [vmem:[%s2 + $0x144] sm:$0xf]
      %v333 = vld [vmem:[%s2 + $0x148] sm:$0xf]
      %v334 = vld [vmem:[%s2 + $0x14c] sm:$0xf]
      %v335 = vld [vmem:[%s2 + $0x150] sm:$0xf]
      %v336 = vld [vmem:[%s2 + $0x154] sm:$0xf]
      %v337 = vld [vmem:[%s2 + $0x158] sm:$0xf]
      %v338 = vld [vmem:[%s2 + $0x15c] sm:$0xf]
      %v339 = vld [vmem:[%s2 + $0x160] sm:$0xf]
      %v340 = vld [vmem:[%s2 + $0x164] sm:$0xf]
      %v341 = vld [vmem:[%s2 + $0x168] sm:$0xf]
      %v342 = vld [vmem:[%s2 + $0x16c] sm:$0xf]
      %v343 = vld [vmem:[%s2 + $0x170] sm:$0xf]
      %v344 = vld [vmem:[%s2 + $0x174] sm:$0xf]
      %v345 = vld [vmem:[%s2 + $0x178] sm:$0xf]
      %v346 = vld [vmem:[%s2 + $0x17c] sm:$0xf]
      %v347 = vld [vmem:[%s3] sm:$0x1]
      %v348 = vld [vmem:[%s3 + $0x1] sm:$0x1]
      %v349 = vld [vmem:[%s3 + $0x2] sm:$0x1]
      %v350 = vld [vmem:[%s3 + $0x3] sm:$0x1]
      %v367 = vunpack.c.l.b16 %v235
      %v368 = vunpack.c.l.b16 %v236
      %v369 = vunpack.c.l.b16 %v237
      %v370 = vunpack.c.l.b16 %v238
      %v371 = vunpack.c.l.b16 %v239
      %v372 = vunpack.c.l.b16 %v240
      %v373 = vunpack.c.l.b16 %v241
      %v374 = vunpack.c.l.b16 %v242
      %v375 = vunpack.c.l.b16 %v243
      %v376 = vunpack.c.l.b16 %v244
      %v377 = vunpack.c.l.b16 %v245
      %v378 = vunpack.c.l.b16 %v246
      %v379 = vunpack.c.l.b16 %v247
      %v380 = vunpack.c.l.b16 %v248
      %v381 = vunpack.c.l.b16 %v249
      %v382 = vunpack.c.l.b16 %v250
      %v383 = vpack.c.b16 %v368, %v367
      %v384 = vpack.c.b16 %v370, %v369
      %v385 = vpack.c.b16 %v372, %v371
      %v386 = vpack.c.b16 %v374, %v373
      %v387 = vpack.c.b16 %v376, %v375
      %v388 = vpack.c.b16 %v378, %v377
      %v389 = vpack.c.b16 %v380, %v379
      %v390 = vpack.c.b16 %v382, %v381
      %v415 = vunpack.c.l.b16 %v251
      %v416 = vunpack.c.l.b16 %v252
      %v417 = vunpack.c.l.b16 %v253
      %v418 = vunpack.c.l.b16 %v254
      %v419 = vunpack.c.l.b16 %v255
      %v420 = vunpack.c.l.b16 %v256
      %v421 = vunpack.c.l.b16 %v257
      %v422 = vunpack.c.l.b16 %v258
      %v423 = vunpack.c.l.b16 %v259
      %v424 = vunpack.c.l.b16 %v260
      %v425 = vunpack.c.l.b16 %v261
      %v426 = vunpack.c.l.b16 %v262
      %v427 = vunpack.c.l.b16 %v263
      %v428 = vunpack.c.l.b16 %v264
      %v429 = vunpack.c.l.b16 %v265
      %v430 = vunpack.c.l.b16 %v266
      %v431 = vpack.c.b16 %v416, %v415
      %v432 = vpack.c.b16 %v418, %v417
      %v433 = vpack.c.b16 %v420, %v419
      %v434 = vpack.c.b16 %v422, %v421
      %v435 = vpack.c.b16 %v424, %v423
      %v436 = vpack.c.b16 %v426, %v425
      %v437 = vpack.c.b16 %v428, %v427
      %v438 = vpack.c.b16 %v430, %v429
      %447 = vmatprep.subr.bf16.mxu0 0
      %448 = vmatpush1.bf16.msra.mxu0 %v431
      %449 = vmatprep.subr.bf16.mxu0 0
      %450 = vmatpush1.bf16.msra.mxu0 %v432
      %451 = vmatprep.subr.bf16.mxu0 0
      %452 = vmatpush1.bf16.msra.mxu0 %v433
      %453 = vmatprep.subr.bf16.mxu0 0
      %454 = vmatpush1.bf16.msra.mxu0 %v434
      %455 = vmatprep.subr.bf16.mxu0 0
      %456 = vmatpush1.bf16.msra.mxu0 %v435
      %457 = vmatprep.subr.bf16.mxu0 0
      %458 = vmatpush1.bf16.msra.mxu0 %v436
      %459 = vmatprep.subr.bf16.mxu0 0
      %460 = vmatpush1.bf16.msra.mxu0 %v437
      %461 = vmatprep.subr.bf16.mxu0 0
      %462 = vmatpush1.bf16.msra.mxu0 %v438
      %463 = vmatprep.subr.bf16.mxu0 0
      %464 = vmatpush1.bf16.msra.mxu0 0
      %465 = vmatprep.subr.bf16.mxu0 0
      %466 = vmatpush1.bf16.msra.mxu0 0
      %467 = vmatprep.subr.bf16.mxu0 0
      %468 = vmatpush1.bf16.msra.mxu0 0
      %469 = vmatprep.subr.bf16.mxu0 0
      %470 = vmatpush1.bf16.msra.mxu0 0
      %471 = vmatprep.subr.bf16.mxu0 0
      %472 = vmatpush1.bf16.msra.mxu0 0
      %473 = vmatprep.subr.bf16.mxu0 0
      %474 = vmatpush1.bf16.msra.mxu0 0
      %475 = vmatprep.subr.bf16.mxu0 0
      %476 = vmatpush1.bf16.msra.mxu0 0
      %477 = vmatprep.subr.bf16.mxu0 0
      %478 = vmatpush1.bf16.msra.mxu0 0
      %479 = vmatprep.mubr.bf16.mxu0 0
      %480 = vmatmul.mubr.bf16.gmra.mrb[0].mxu0 %v383
      %v481 = vpop.f32.mrb[0].mxu0
      %v482 = vadd.f32 0.0, %v481
      %v483 = vpop.f32.mrb[0].mxu0
      %v484 = vpop.f32.mrb[0].mxu0
      %v485 = vadd.f32 0.0, %v484
      %v486 = vpop.f32.mrb[0].mxu0
      %487 = vmatprep.mubr.bf16.mxu0 0
      %488 = vmatmul.mubr.bf16.gmra.mrb[0].mxu0 %v384
      %v489 = vpop.f32.mrb[0].mxu0
      %v490 = vadd.f32 0.0, %v489
      %v491 = vpop.f32.mrb[0].mxu0
      %v492 = vpop.f32.mrb[0].mxu0
      %v493 = vadd.f32 0.0, %v492
      %v494 = vpop.f32.mrb[0].mxu0
      %495 = vmatprep.mubr.bf16.mxu0 0
      %496 = vmatmul.mubr.bf16.gmra.mrb[0].mxu0 %v385
      %v497 = vpop.f32.mrb[0].mxu0
      %v498 = vadd.f32 0.0, %v497
      %v499 = vpop.f32.mrb[0].mxu0
      %v500 = vpop.f32.mrb[0].mxu0
      %v501 = vadd.f32 0.0, %v500
      %v502 = vpop.f32.mrb[0].mxu0
      %503 = vmatprep.mubr.bf16.mxu0 0
      %504 = vmatmul.mubr.bf16.gmra.mrb[0].mxu0 %v386
      %v505 = vpop.f32.mrb[0].mxu0
      %v506 = vadd.f32 0.0, %v505
      %v507 = vpop.f32.mrb[0].mxu0
      %v508 = vpop.f32.mrb[0].mxu0
      %v509 = vadd.f32 0.0, %v508
      %v510 = vpop.f32.mrb[0].mxu0
      %511 = vmatprep.mubr.bf16.mxu0 0
      %512 = vmatmul.mubr.bf16.gmra.mrb[0].mxu0 %v387
      %v513 = vpop.f32.mrb[0].mxu0
      %v514 = vadd.f32 0.0, %v513
      %v515 = vpop.f32.mrb[0].mxu0
      %v516 = vpop.f32.mrb[0].mxu0
      %v517 = vadd.f32 0.0, %v516
      %v518 = vpop.f32.mrb[0].mxu0
      %519 = vmatprep.mubr.bf16.mxu0 0
      %520 = vmatmul.mubr.bf16.gmra.mrb[0].mxu0 %v388
      %v521 = vpop.f32.mrb[0].mxu0
      %v522 = vadd.f32 0.0, %v521
      %v523 = vpop.f32.mrb[0].mxu0
      %v524 = vpop.f32.mrb[0].mxu0
      %v525 = vadd.f32 0.0, %v524
      %v526 = vpop.f32.mrb[0].mxu0
      %527 = vmatprep.mubr.bf16.mxu0 0
      %528 = vmatmul.mubr.bf16.gmra.mrb[0].mxu0 %v389
      %v529 = vpop.f32.mrb[0].mxu0
      %v530 = vadd.f32 0.0, %v529
      %v531 = vpop.f32.mrb[0].mxu0
      %v532 = vpop.f32.mrb[0].mxu0
      %v533 = vadd.f32 0.0, %v532
      %v534 = vpop.f32.mrb[0].mxu0
      %535 = vmatprep.mubr.bf16.mxu0 0
      %536 = vmatmul.mubr.bf16.gmra.mrb[0].mxu0 %v390
      %v537 = vpop.f32.mrb[0].mxu0
      %v538 = vadd.f32 0.0, %v537
      %v539 = vpop.f32.mrb[0].mxu0
      %v540 = vpop.f32.mrb[0].mxu0
      %v541 = vadd.f32 0.0, %v540
      %v542 = vpop.f32.mrb[0].mxu0
      %543 = vdwg.mxu0
      %v544 = vpack.c.bf16 %v485, %v482
      %v545 = vpack.c.bf16 %v493, %v490
      %v546 = vpack.c.bf16 %v501, %v498
      %v547 = vpack.c.bf16 %v509, %v506
      %v548 = vpack.c.bf16 %v517, %v514
      %v549 = vpack.c.bf16 %v525, %v522
      %v550 = vpack.c.bf16 %v533, %v530
      %v551 = vpack.c.bf16 %v541, %v538
      %v552 = vlaneseq
      %v553 = vshrl.u32 %v552, 7
      %v554 = vsub.s32 0, %v553
      %v555 = vrot.slane %v347, %v554
      %v572 = vunpack.c.l.b16 %v219
      %v573 = vunpack.c.l.b16 %v220
      %v574 = vunpack.c.l.b16 %v221
      %v575 = vunpack.c.l.b16 %v222
      %v576 = vunpack.c.l.b16 %v223
      %v577 = vunpack.c.l.b16 %v224
      %v578 = vunpack.c.l.b16 %v225
      %v579 = vunpack.c.l.b16 %v226
      %v580 = vunpack.c.l.b16 %v227
      %v581 = vunpack.c.l.b16 %v228
      %v582 = vunpack.c.l.b16 %v229
      %v583 = vunpack.c.l.b16 %v230
      %v584 = vunpack.c.l.b16 %v231
      %v585 = vunpack.c.l.b16 %v232
      %v586 = vunpack.c.l.b16 %v233
      %v587 = vunpack.c.l.b16 %v234
      %v588 = vpack.c.b16 %v573, %v572
      %v589 = vpack.c.b16 %v575, %v574
      %v590 = vpack.c.b16 %v577, %v576
      %v591 = vpack.c.b16 %v579, %v578
      %v592 = vpack.c.b16 %v581, %v580
      %v593 = vpack.c.b16 %v583, %v582
      %v594 = vpack.c.b16 %v585, %v584
      %v595 = vpack.c.b16 %v587, %v586
      %604 = vmatprep.subr.bf16.mxu0 0
      %605 = vmatpush1.bf16.msra.mxu0 %v544
      %606 = vmatprep.subr.bf16.mxu0 0
      %607 = vmatpush1.bf16.msra.mxu0 %v545
      %608 = vmatprep.subr.bf16.mxu0 0
      %609 = vmatpush1.bf16.msra.mxu0 %v546
      %610 = vmatprep.subr.bf16.mxu0 0
      %611 = vmatpush1.bf16.msra.mxu0 %v547
      %612 = vmatprep.subr.bf16.mxu0 0
      %613 = vmatpush1.bf16.msra.mxu0 %v548
      %614 = vmatprep.subr.bf16.mxu0 0
      %615 = vmatpush1.bf16.msra.mxu0 %v549
      %616 = vmatprep.subr.bf16.mxu0 0
      %617 = vmatpush1.bf16.msra.mxu0 %v550
      %618 = vmatprep.subr.bf16.mxu0 0
      %619 = vmatpush1.bf16.msra.mxu0 %v551
      %620 = vmatprep.subr.bf16.mxu0 0
      %621 = vmatpush1.bf16.msra.mxu0 0
      %622 = vmatprep.subr.bf16.mxu0 0
      %623 = vmatpush1.bf16.msra.mxu0 0
      %624 = vmatprep.subr.bf16.mxu0 0
      %625 = vmatpush1.bf16.msra.mxu0 0
      %626 = vmatprep.subr.bf16.mxu0 0
      %627 = vmatpush1.bf16.msra.mxu0 0
      %628 = vmatprep.subr.bf16.mxu0 0
      %629 = vmatpush1.bf16.msra.mxu0 0
      %630 = vmatprep.subr.bf16.mxu0 0
      %631 = vmatpush1.bf16.msra.mxu0 0
      %632 = vmatprep.subr.bf16.mxu0 0
      %633 = vmatpush1.bf16.msra.mxu0 0
      %634 = vmatprep.subr.bf16.mxu0 0
      %635 = vmatpush1.bf16.msra.mxu0 0
      %636 = vmatprep.mubr.bf16.mxu0 0
      %637 = vmatmul.mubr.bf16.gmra.mrb[0].mxu0 %v588
      %v638 = vpop.f32.mrb[0].mxu0
      %v639 = vadd.f32 %v555, %v638
      %v640 = vpop.f32.mrb[0].mxu0
      %v641 = vpop.f32.mrb[0].mxu0
      %v642 = vadd.f32 %v555, %v641
      %v643 = vpop.f32.mrb[0].mxu0
      %644 = vmatprep.mubr.bf16.mxu0 0
      %645 = vmatmul.mubr.bf16.gmra.mrb[0].mxu0 %v589
      %v646 = vpop.f32.mrb[0].mxu0
      %v647 = vadd.f32 %v555, %v646
      %v648 = vpop.f32.mrb[0].mxu0
      %v649 = vpop.f32.mrb[0].mxu0
      %v650 = vadd.f32 %v555, %v649
      %v651 = vpop.f32.mrb[0].mxu0
      %652 = vmatprep.mubr.bf16.mxu0 0
      %653 = vmatmul.mubr.bf16.gmra.mrb[0].mxu0 %v590
      %v654 = vpop.f32.mrb[0].mxu0
      %v655 = vadd.f32 %v555, %v654
      %v656 = vpop.f32.mrb[0].mxu0
      %v657 = vpop.f32.mrb[0].mxu0
      %v658 = vadd.f32 %v555, %v657
      %v659 = vpop.f32.mrb[0].mxu0
      %660 = vmatprep.mubr.bf16.mxu0 0
      %661 = vmatmul.mubr.bf16.gmra.mrb[0].mxu0 %v591
      %v662 = vpop.f32.mrb[0].mxu0
      %v663 = vadd.f32 %v555, %v662
      %v664 = vpop.f32.mrb[0].mxu0
      %v665 = vpop.f32.mrb[0].mxu0
      %v666 = vadd.f32 %v555, %v665
      %v667 = vpop.f32.mrb[0].mxu0
      %668 = vmatprep.mubr.bf16.mxu0 0
      %669 = vmatmul.mubr.bf16.gmra.mrb[0].mxu0 %v592
      %v670 = vpop.f32.mrb[0].mxu0
      %v671 = vadd.f32 %v555, %v670
      %v672 = vpop.f32.mrb[0].mxu0
      %v673 = vpop.f32.mrb[0].mxu0
      %v674 = vadd.f32 %v555, %v673
      %v675 = vpop.f32.mrb[0].mxu0
      %676 = vmatprep.mubr.bf16.mxu0 0
      %677 = vmatmul.mubr.bf16.gmra.mrb[0].mxu0 %v593
      %v678 = vpop.f32.mrb[0].mxu0
      %v679 = vadd.f32 %v555, %v678
      %v680 = vpop.f32.mrb[0].mxu0
      %v681 = vpop.f32.mrb[0].mxu0
      %v682 = vadd.f32 %v555, %v681
      %v683 = vpop.f32.mrb[0].mxu0
      %684 = vmatprep.mubr.bf16.mxu0 0
      %685 = vmatmul.mubr.bf16.gmra.mrb[0].mxu0 %v594
      %v686 = vpop.f32.mrb[0].mxu0
      %v687 = vadd.f32 %v555, %v686
      %v688 = vpop.f32.mrb[0].mxu0
      %v689 = vpop.f32.mrb[0].mxu0
      %v690 = vadd.f32 %v555, %v689
      %v691 = vpop.f32.mrb[0].mxu0
      %692 = vmatprep.mubr.bf16.mxu0 0
      %693 = vmatmul.mubr.bf16.gmra.mrb[0].mxu0 %v595
      %v694 = vpop.f32.mrb[0].mxu0
      %v695 = vadd.f32 %v555, %v694
      %v696 = vpop.f32.mrb[0].mxu0
      %v697 = vpop.f32.mrb[0].mxu0
      %v698 = vadd.f32 %v555, %v697
      %v699 = vpop.f32.mrb[0].mxu0
      %700 = vdwg.mxu0
      %v701 = vmul.f32 %v639, %v639
      %v702 = vmul.f32 %v642, %v642
      %v703 = vmul.f32 %v647, %v647
      %v704 = vmul.f32 %v650, %v650
      %v705 = vmul.f32 %v655, %v655
      %v706 = vmul.f32 %v658, %v658
      %v707 = vmul.f32 %v663, %v663
      %v708 = vmul.f32 %v666, %v666
      %v709 = vmul.f32 %v671, %v671
      %v710 = vmul.f32 %v674, %v674
      %v711 = vmul.f32 %v679, %v679
      %v712 = vmul.f32 %v682, %v682
      %v713 = vmul.f32 %v687, %v687
      %v714 = vmul.f32 %v690, %v690
      %v715 = vmul.f32 %v695, %v695
      %v716 = vmul.f32 %v698, %v698
      %717 = vadd.xlane.f32.xlu0 %v701
      %v718 = vpop.xlane.xlu0 %717
      %719 = vadd.xlane.f32.xlu0 %v702
      %v720 = vpop.xlane.xlu0 %719
      %721 = vadd.xlane.f32.xlu0 %v703
      %v722 = vpop.xlane.xlu0 %721
      %723 = vadd.xlane.f32.xlu0 %v704
      %v724 = vpop.xlane.xlu0 %723
      %725 = vadd.xlane.f32.xlu0 %v705
      %v726 = vpop.xlane.xlu0 %725
      %727 = vadd.xlane.f32.xlu0 %v706
      %v728 = vpop.xlane.xlu0 %727
      %729 = vadd.xlane.f32.xlu0 %v707
      %v730 = vpop.xlane.xlu0 %729
      %731 = vadd.xlane.f32.xlu0 %v708
      %v732 = vpop.xlane.xlu0 %731
      %733 = vadd.xlane.f32.xlu0 %v709
      %v734 = vpop.xlane.xlu0 %733
      %735 = vadd.xlane.f32.xlu0 %v710
      %v736 = vpop.xlane.xlu0 %735
      %737 = vadd.xlane.f32.xlu0 %v711
      %v738 = vpop.xlane.xlu0 %737
      %739 = vadd.xlane.f32.xlu0 %v712
      %v740 = vpop.xlane.xlu0 %739
      %741 = vadd.xlane.f32.xlu0 %v713
      %v742 = vpop.xlane.xlu0 %741
      %743 = vadd.xlane.f32.xlu0 %v714
      %v744 = vpop.xlane.xlu0 %743
      %745 = vadd.xlane.f32.xlu0 %v715
      %v746 = vpop.xlane.xlu0 %745
      %747 = vadd.xlane.f32.xlu0 %v716
      %v748 = vpop.xlane.xlu0 %747
      %v749 = vmax.f32 %v718, 1e-24
      %v750 = vmax.f32 %v720, 1e-24
      %v751 = vmax.f32 %v722, 1e-24
      %v752 = vmax.f32 %v724, 1e-24
      %v753 = vmax.f32 %v726, 1e-24
      %v754 = vmax.f32 %v728, 1e-24
      %v755 = vmax.f32 %v730, 1e-24
      %v756 = vmax.f32 %v732, 1e-24
      %v757 = vmax.f32 %v734, 1e-24
      %v758 = vmax.f32 %v736, 1e-24
      %v759 = vmax.f32 %v738, 1e-24
      %v760 = vmax.f32 %v740, 1e-24
      %v761 = vmax.f32 %v742, 1e-24
      %v762 = vmax.f32 %v744, 1e-24
      %v763 = vmax.f32 %v746, 1e-24
      %v764 = vmax.f32 %v748, 1e-24
      %v765 = vrsqrt.pop %v749
      %v766 = vrsqrt.pop %v750
      %v767 = vrsqrt.pop %v751
      %v768 = vrsqrt.pop %v752
      %v769 = vrsqrt.pop %v753
      %v770 = vrsqrt.pop %v754
      %v771 = vrsqrt.pop %v755
      %v772 = vrsqrt.pop %v756
      %v773 = vrsqrt.pop %v757
      %v774 = vrsqrt.pop %v758
      %v775 = vrsqrt.pop %v759
      %v776 = vrsqrt.pop %v760
      %v777 = vrsqrt.pop %v761
      %v778 = vrsqrt.pop %v762
      %v779 = vrsqrt.pop %v763
      %v780 = vrsqrt.pop %v764
      %v781 = vmul.f32 %v639, %v765
      %v782 = vmul.f32 %v642, %v766
      %v783 = vmul.f32 %v647, %v767
      %v784 = vmul.f32 %v650, %v768
      %v785 = vmul.f32 %v655, %v769
      %v786 = vmul.f32 %v658, %v770
      %v787 = vmul.f32 %v663, %v771
      %v788 = vmul.f32 %v666, %v772
      %v789 = vmul.f32 %v671, %v773
      %v790 = vmul.f32 %v674, %v774
      %v791 = vmul.f32 %v679, %v775
      %v792 = vmul.f32 %v682, %v776
      %v793 = vmul.f32 %v687, %v777
      %v794 = vmul.f32 %v690, %v778
      %v795 = vmul.f32 %v695, %v779
      %v796 = vmul.f32 %v698, %v780
      %v797 = vmax.f32 %v781, 0.0
      %v798 = vmax.f32 %v782, 0.0
      %v799 = vmax.f32 %v783, 0.0
      %v800 = vmax.f32 %v784, 0.0
      %v801 = vmax.f32 %v785, 0.0
      %v802 = vmax.f32 %v786, 0.0
      %v803 = vmax.f32 %v787, 0.0
      %v804 = vmax.f32 %v788, 0.0
      %v805 = vmax.f32 %v789, 0.0
      %v806 = vmax.f32 %v790, 0.0
      %v807 = vmax.f32 %v791, 0.0
      %v808 = vmax.f32 %v792, 0.0
      %v809 = vmax.f32 %v793, 0.0
      %v810 = vmax.f32 %v794, 0.0
      %v811 = vmax.f32 %v795, 0.0
      %v812 = vmax.f32 %v796, 0.0
      %v813 = vpack.c.bf16 %v798, %v797
      %v814 = vpack.c.bf16 %v800, %v799
      %v815 = vpack.c.bf16 %v802, %v801
      %v816 = vpack.c.bf16 %v804, %v803
      %v817 = vpack.c.bf16 %v806, %v805
      %v818 = vpack.c.bf16 %v808, %v807
      %v819 = vpack.c.bf16 %v810, %v809
      %v820 = vpack.c.bf16 %v812, %v811
      %v837 = vunpack.c.l.b16 %v267
      %v838 = vunpack.c.l.b16 %v268
      %v839 = vunpack.c.l.b16 %v269
      %v840 = vunpack.c.l.b16 %v270
      %v841 = vunpack.c.l.b16 %v271
      %v842 = vunpack.c.l.b16 %v272
      %v843 = vunpack.c.l.b16 %v273
      %v844 = vunpack.c.l.b16 %v274
      %v845 = vunpack.c.l.b16 %v275
      %v846 = vunpack.c.l.b16 %v276
      %v847 = vunpack.c.l.b16 %v277
      %v848 = vunpack.c.l.b16 %v278
      %v849 = vunpack.c.l.b16 %v279
      %v850 = vunpack.c.l.b16 %v280
      %v851 = vunpack.c.l.b16 %v281
      %v852 = vunpack.c.l.b16 %v282
      %v853 = vpack.c.b16 %v838, %v837
      %v854 = vpack.c.b16 %v840, %v839
      %v855 = vpack.c.b16 %v842, %v841
      %v856 = vpack.c.b16 %v844, %v843
      %v857 = vpack.c.b16 %v846, %v845
      %v858 = vpack.c.b16 %v848, %v847
      %v859 = vpack.c.b16 %v850, %v849
      %v860 = vpack.c.b16 %v852, %v851
      %869 = vmatprep.subr.bf16.mxu0 0
      %870 = vmatpush1.bf16.msra.mxu0 %v853
      %871 = vmatprep.subr.bf16.mxu0 0
      %872 = vmatpush1.bf16.msra.mxu0 %v854
      %873 = vmatprep.subr.bf16.mxu0 0
      %874 = vmatpush1.bf16.msra.mxu0 %v855
      %875 = vmatprep.subr.bf16.mxu0 0
      %876 = vmatpush1.bf16.msra.mxu0 %v856
      %877 = vmatprep.subr.bf16.mxu0 0
      %878 = vmatpush1.bf16.msra.mxu0 %v857
      %879 = vmatprep.subr.bf16.mxu0 0
      %880 = vmatpush1.bf16.msra.mxu0 %v858
      %881 = vmatprep.subr.bf16.mxu0 0
      %882 = vmatpush1.bf16.msra.mxu0 %v859
      %883 = vmatprep.subr.bf16.mxu0 0
      %884 = vmatpush1.bf16.msra.mxu0 %v860
      %885 = vmatprep.subr.bf16.mxu0 0
      %886 = vmatpush1.bf16.msra.mxu0 0
      %887 = vmatprep.subr.bf16.mxu0 0
      %888 = vmatpush1.bf16.msra.mxu0 0
      %889 = vmatprep.subr.bf16.mxu0 0
      %890 = vmatpush1.bf16.msra.mxu0 0
      %891 = vmatprep.subr.bf16.mxu0 0
      %892 = vmatpush1.bf16.msra.mxu0 0
      %893 = vmatprep.subr.bf16.mxu0 0
      %894 = vmatpush1.bf16.msra.mxu0 0
      %895 = vmatprep.subr.bf16.mxu0 0
      %896 = vmatpush1.bf16.msra.mxu0 0
      %897 = vmatprep.subr.bf16.mxu0 0
      %898 = vmatpush1.bf16.msra.mxu0 0
      %899 = vmatprep.subr.bf16.mxu0 0
      %900 = vmatpush1.bf16.msra.mxu0 0
      %901 = vmatprep.mubr.bf16.mxu0 0
      %902 = vmatmul.mubr.bf16.gmra.mrb[0].mxu0 %v813
      %v903 = vpop.f32.mrb[0].mxu0
      %v904 = vadd.f32 0.0, %v903
      %v905 = vpop.f32.mrb[0].mxu0
      %v906 = vpop.f32.mrb[0].mxu0
      %v907 = vadd.f32 0.0, %v906
      %v908 = vpop.f32.mrb[0].mxu0
      %909 = vmatprep.mubr.bf16.mxu0 0
      %910 = vmatmul.mubr.bf16.gmra.mrb[0].mxu0 %v814
      %v911 = vpop.f32.mrb[0].mxu0
      %v912 = vadd.f32 0.0, %v911
      %v913 = vpop.f32.mrb[0].mxu0
      %v914 = vpop.f32.mrb[0].mxu0
      %v915 = vadd.f32 0.0, %v914
      %v916 = vpop.f32.mrb[0].mxu0
      %917 = vmatprep.mubr.bf16.mxu0 0
      %918 = vmatmul.mubr.bf16.gmra.mrb[0].mxu0 %v815
      %v919 = vpop.f32.mrb[0].mxu0
      %v920 = vadd.f32 0.0, %v919
      %v921 = vpop.f32.mrb[0].mxu0
      %v922 = vpop.f32.mrb[0].mxu0
      %v923 = vadd.f32 0.0, %v922
      %v924 = vpop.f32.mrb[0].mxu0
      %925 = vmatprep.mubr.bf16.mxu0 0
      %926 = vmatmul.mubr.bf16.gmra.mrb[0].mxu0 %v816
      %v927 = vpop.f32.mrb[0].mxu0
      %v928 = vadd.f32 0.0, %v927
      %v929 = vpop.f32.mrb[0].mxu0
      %v930 = vpop.f32.mrb[0].mxu0
      %v931 = vadd.f32 0.0, %v930
      %v932 = vpop.f32.mrb[0].mxu0
      %933 = vmatprep.mubr.bf16.mxu0 0
      %934 = vmatmul.mubr.bf16.gmra.mrb[0].mxu0 %v817
      %v935 = vpop.f32.mrb[0].mxu0
      %v936 = vadd.f32 0.0, %v935
      %v937 = vpop.f32.mrb[0].mxu0
      %v938 = vpop.f32.mrb[0].mxu0
      %v939 = vadd.f32 0.0, %v938
      %v940 = vpop.f32.mrb[0].mxu0
      %941 = vmatprep.mubr.bf16.mxu0 0
      %942 = vmatmul.mubr.bf16.gmra.mrb[0].mxu0 %v818
      %v943 = vpop.f32.mrb[0].mxu0
      %v944 = vadd.f32 0.0, %v943
      %v945 = vpop.f32.mrb[0].mxu0
      %v946 = vpop.f32.mrb[0].mxu0
      %v947 = vadd.f32 0.0, %v946
      %v948 = vpop.f32.mrb[0].mxu0
      %949 = vmatprep.mubr.bf16.mxu0 0
      %950 = vmatmul.mubr.bf16.gmra.mrb[0].mxu0 %v819
      %v951 = vpop.f32.mrb[0].mxu0
      %v952 = vadd.f32 0.0, %v951
      %v953 = vpop.f32.mrb[0].mxu0
      %v954 = vpop.f32.mrb[0].mxu0
      %v955 = vadd.f32 0.0, %v954
      %v956 = vpop.f32.mrb[0].mxu0
      %957 = vmatprep.mubr.bf16.mxu0 0
      %958 = vmatmul.mubr.bf16.gmra.mrb[0].mxu0 %v820
      %v959 = vpop.f32.mrb[0].mxu0
      %v960 = vadd.f32 0.0, %v959
      %v961 = vpop.f32.mrb[0].mxu0
      %v962 = vpop.f32.mrb[0].mxu0
      %v963 = vadd.f32 0.0, %v962
      %v964 = vpop.f32.mrb[0].mxu0
      %965 = vdwg.mxu0
      %v966 = vpack.c.bf16 %v907, %v904
      %v967 = vpack.c.bf16 %v915, %v912
      %v968 = vpack.c.bf16 %v923, %v920
      %v969 = vpack.c.bf16 %v931, %v928
      %v970 = vpack.c.bf16 %v939, %v936
      %v971 = vpack.c.bf16 %v947, %v944
      %v972 = vpack.c.bf16 %v955, %v952
      %v973 = vpack.c.bf16 %v963, %v960
      %v974 = vlaneseq
      %v975 = vshrl.u32 %v974, 7
      %v976 = vsub.s32 0, %v975
      %v977 = vrot.slane %v348, %v976
      %978 = vmatprep.subr.bf16.mxu0 0
      %979 = vmatpush1.bf16.msra.mxu0 %v966
      %980 = vmatprep.subr.bf16.mxu0 0
      %981 = vmatpush1.bf16.msra.mxu0 %v967
      %982 = vmatprep.subr.bf16.mxu0 0
      %983 = vmatpush1.bf16.msra.mxu0 %v968
      %984 = vmatprep.subr.bf16.mxu0 0
      %985 = vmatpush1.bf16.msra.mxu0 %v969
      %986 = vmatprep.subr.bf16.mxu0 0
      %987 = vmatpush1.bf16.msra.mxu0 %v970
      %988 = vmatprep.subr.bf16.mxu0 0
      %989 = vmatpush1.bf16.msra.mxu0 %v971
      %990 = vmatprep.subr.bf16.mxu0 0
      %991 = vmatpush1.bf16.msra.mxu0 %v972
      %992 = vmatprep.subr.bf16.mxu0 0
      %993 = vmatpush1.bf16.msra.mxu0 %v973
      %994 = vmatprep.subr.bf16.mxu0 0
      %995 = vmatpush1.bf16.msra.mxu0 0
      %996 = vmatprep.subr.bf16.mxu0 0
      %997 = vmatpush1.bf16.msra.mxu0 0
      %998 = vmatprep.subr.bf16.mxu0 0
      %999 = vmatpush1.bf16.msra.mxu0 0
      %1000 = vmatprep.subr.bf16.mxu0 0
      %1001 = vmatpush1.bf16.msra.mxu0 0
      %1002 = vmatprep.subr.bf16.mxu0 0
      %1003 = vmatpush1.bf16.msra.mxu0 0
      %1004 = vmatprep.subr.bf16.mxu0 0
      %1005 = vmatpush1.bf16.msra.mxu0 0
      %1006 = vmatprep.subr.bf16.mxu0 0
      %1007 = vmatpush1.bf16.msra.mxu0 0
      %1008 = vmatprep.subr.bf16.mxu0 0
      %1009 = vmatpush1.bf16.msra.mxu0 0
      %1010 = vmatprep.mubr.bf16.mxu0 0
      %1011 = vmatmul.mubr.bf16.gmra.mrb[0].mxu0 %v588
      %v1012 = vpop.f32.mrb[0].mxu0
      %v1013 = vadd.f32 %v977, %v1012
      %v1014 = vpop.f32.mrb[0].mxu0
      %v1015 = vpop.f32.mrb[0].mxu0
      %v1016 = vadd.f32 %v977, %v1015
      %v1017 = vpop.f32.mrb[0].mxu0
      %1018 = vmatprep.mubr.bf16.mxu0 0
      %1019 = vmatmul.mubr.bf16.gmra.mrb[0].mxu0 %v589
      %v1020 = vpop.f32.mrb[0].mxu0
      %v1021 = vadd.f32 %v977, %v1020
      %v1022 = vpop.f32.mrb[0].mxu0
      %v1023 = vpop.f32.mrb[0].mxu0
      %v1024 = vadd.f32 %v977, %v1023
      %v1025 = vpop.f32.mrb[0].mxu0
      %1026 = vmatprep.mubr.bf16.mxu0 0
      %1027 = vmatmul.mubr.bf16.gmra.mrb[0].mxu0 %v590
      %v1028 = vpop.f32.mrb[0].mxu0
      %v1029 = vadd.f32 %v977, %v1028
      %v1030 = vpop.f32.mrb[0].mxu0
      %v1031 = vpop.f32.mrb[0].mxu0
      %v1032 = vadd.f32 %v977, %v1031
      %v1033 = vpop.f32.mrb[0].mxu0
      %1034 = vmatprep.mubr.bf16.mxu0 0
      %1035 = vmatmul.mubr.bf16.gmra.mrb[0].mxu0 %v591
      %v1036 = vpop.f32.mrb[0].mxu0
      %v1037 = vadd.f32 %v977, %v1036
      %v1038 = vpop.f32.mrb[0].mxu0
      %v1039 = vpop.f32.mrb[0].mxu0
      %v1040 = vadd.f32 %v977, %v1039
      %v1041 = vpop.f32.mrb[0].mxu0
      %1042 = vmatprep.mubr.bf16.mxu0 0
      %1043 = vmatmul.mubr.bf16.gmra.mrb[0].mxu0 %v592
      %v1044 = vpop.f32.mrb[0].mxu0
      %v1045 = vadd.f32 %v977, %v1044
      %v1046 = vpop.f32.mrb[0].mxu0
      %v1047 = vpop.f32.mrb[0].mxu0
      %v1048 = vadd.f32 %v977, %v1047
      %v1049 = vpop.f32.mrb[0].mxu0
      %1050 = vmatprep.mubr.bf16.mxu0 0
      %1051 = vmatmul.mubr.bf16.gmra.mrb[0].mxu0 %v593
      %v1052 = vpop.f32.mrb[0].mxu0
      %v1053 = vadd.f32 %v977, %v1052
      %v1054 = vpop.f32.mrb[0].mxu0
      %v1055 = vpop.f32.mrb[0].mxu0
      %v1056 = vadd.f32 %v977, %v1055
      %v1057 = vpop.f32.mrb[0].mxu0
      %1058 = vmatprep.mubr.bf16.mxu0 0
      %1059 = vmatmul.mubr.bf16.gmra.mrb[0].mxu0 %v594
      %v1060 = vpop.f32.mrb[0].mxu0
      %v1061 = vadd.f32 %v977, %v1060
      %v1062 = vpop.f32.mrb[0].mxu0
      %v1063 = vpop.f32.mrb[0].mxu0
      %v1064 = vadd.f32 %v977, %v1063
      %v1065 = vpop.f32.mrb[0].mxu0
      %1066 = vmatprep.mubr.bf16.mxu0 0
      %1067 = vmatmul.mubr.bf16.gmra.mrb[0].mxu0 %v595
      %v1068 = vpop.f32.mrb[0].mxu0
      %v1069 = vadd.f32 %v977, %v1068
      %v1070 = vpop.f32.mrb[0].mxu0
      %v1071 = vpop.f32.mrb[0].mxu0
      %v1072 = vadd.f32 %v977, %v1071
      %v1073 = vpop.f32.mrb[0].mxu0
      %1074 = vdwg.mxu0
      %v1075 = vmul.f32 %v1013, %v1013
      %v1076 = vmul.f32 %v1016, %v1016
      %v1077 = vmul.f32 %v1021, %v1021
      %v1078 = vmul.f32 %v1024, %v1024
      %v1079 = vmul.f32 %v1029, %v1029
      %v1080 = vmul.f32 %v1032, %v1032
      %v1081 = vmul.f32 %v1037, %v1037
      %v1082 = vmul.f32 %v1040, %v1040
      %v1083 = vmul.f32 %v1045, %v1045
      %v1084 = vmul.f32 %v1048, %v1048
      %v1085 = vmul.f32 %v1053, %v1053
      %v1086 = vmul.f32 %v1056, %v1056
      %v1087 = vmul.f32 %v1061, %v1061
      %v1088 = vmul.f32 %v1064, %v1064
      %v1089 = vmul.f32 %v1069, %v1069
      %v1090 = vmul.f32 %v1072, %v1072
      %1091 = vadd.xlane.f32.xlu0 %v1075
      %v1092 = vpop.xlane.xlu0 %1091
      %1093 = vadd.xlane.f32.xlu0 %v1076
      %v1094 = vpop.xlane.xlu0 %1093
      %1095 = vadd.xlane.f32.xlu0 %v1077
      %v1096 = vpop.xlane.xlu0 %1095
      %1097 = vadd.xlane.f32.xlu0 %v1078
      %v1098 = vpop.xlane.xlu0 %1097
      %1099 = vadd.xlane.f32.xlu0 %v1079
      %v1100 = vpop.xlane.xlu0 %1099
      %1101 = vadd.xlane.f32.xlu0 %v1080
      %v1102 = vpop.xlane.xlu0 %1101
      %1103 = vadd.xlane.f32.xlu0 %v1081
      %v1104 = vpop.xlane.xlu0 %1103
      %1105 = vadd.xlane.f32.xlu0 %v1082
      %v1106 = vpop.xlane.xlu0 %1105
      %1107 = vadd.xlane.f32.xlu0 %v1083
      %v1108 = vpop.xlane.xlu0 %1107
      %1109 = vadd.xlane.f32.xlu0 %v1084
      %v1110 = vpop.xlane.xlu0 %1109
      %1111 = vadd.xlane.f32.xlu0 %v1085
      %v1112 = vpop.xlane.xlu0 %1111
      %1113 = vadd.xlane.f32.xlu0 %v1086
      %v1114 = vpop.xlane.xlu0 %1113
      %1115 = vadd.xlane.f32.xlu0 %v1087
      %v1116 = vpop.xlane.xlu0 %1115
      %1117 = vadd.xlane.f32.xlu0 %v1088
      %v1118 = vpop.xlane.xlu0 %1117
      %1119 = vadd.xlane.f32.xlu0 %v1089
      %v1120 = vpop.xlane.xlu0 %1119
      %1121 = vadd.xlane.f32.xlu0 %v1090
      %v1122 = vpop.xlane.xlu0 %1121
      %v1123 = vmax.f32 %v1092, 1e-24
      %v1124 = vmax.f32 %v1094, 1e-24
      %v1125 = vmax.f32 %v1096, 1e-24
      %v1126 = vmax.f32 %v1098, 1e-24
      %v1127 = vmax.f32 %v1100, 1e-24
      %v1128 = vmax.f32 %v1102, 1e-24
      %v1129 = vmax.f32 %v1104, 1e-24
      %v1130 = vmax.f32 %v1106, 1e-24
      %v1131 = vmax.f32 %v1108, 1e-24
      %v1132 = vmax.f32 %v1110, 1e-24
      %v1133 = vmax.f32 %v1112, 1e-24
      %v1134 = vmax.f32 %v1114, 1e-24
      %v1135 = vmax.f32 %v1116, 1e-24
      %v1136 = vmax.f32 %v1118, 1e-24
      %v1137 = vmax.f32 %v1120, 1e-24
      %v1138 = vmax.f32 %v1122, 1e-24
      %v1139 = vrsqrt.pop %v1123
      %v1140 = vrsqrt.pop %v1124
      %v1141 = vrsqrt.pop %v1125
      %v1142 = vrsqrt.pop %v1126
      %v1143 = vrsqrt.pop %v1127
      %v1144 = vrsqrt.pop %v1128
      %v1145 = vrsqrt.pop %v1129
      %v1146 = vrsqrt.pop %v1130
      %v1147 = vrsqrt.pop %v1131
      %v1148 = vrsqrt.pop %v1132
      %v1149 = vrsqrt.pop %v1133
      %v1150 = vrsqrt.pop %v1134
      %v1151 = vrsqrt.pop %v1135
      %v1152 = vrsqrt.pop %v1136
      %v1153 = vrsqrt.pop %v1137
      %v1154 = vrsqrt.pop %v1138
      %v1155 = vmul.f32 %v1013, %v1139
      %v1156 = vmul.f32 %v1016, %v1140
      %v1157 = vmul.f32 %v1021, %v1141
      %v1158 = vmul.f32 %v1024, %v1142
      %v1159 = vmul.f32 %v1029, %v1143
      %v1160 = vmul.f32 %v1032, %v1144
      %v1161 = vmul.f32 %v1037, %v1145
      %v1162 = vmul.f32 %v1040, %v1146
      %v1163 = vmul.f32 %v1045, %v1147
      %v1164 = vmul.f32 %v1048, %v1148
      %v1165 = vmul.f32 %v1053, %v1149
      %v1166 = vmul.f32 %v1056, %v1150
      %v1167 = vmul.f32 %v1061, %v1151
      %v1168 = vmul.f32 %v1064, %v1152
      %v1169 = vmul.f32 %v1069, %v1153
      %v1170 = vmul.f32 %v1072, %v1154
      %v1171 = vmax.f32 %v1155, 0.0
      %v1172 = vmax.f32 %v1156, 0.0
      %v1173 = vmax.f32 %v1157, 0.0
      %v1174 = vmax.f32 %v1158, 0.0
      %v1175 = vmax.f32 %v1159, 0.0
      %v1176 = vmax.f32 %v1160, 0.0
      %v1177 = vmax.f32 %v1161, 0.0
      %v1178 = vmax.f32 %v1162, 0.0
      %v1179 = vmax.f32 %v1163, 0.0
      %v1180 = vmax.f32 %v1164, 0.0
      %v1181 = vmax.f32 %v1165, 0.0
      %v1182 = vmax.f32 %v1166, 0.0
      %v1183 = vmax.f32 %v1167, 0.0
      %v1184 = vmax.f32 %v1168, 0.0
      %v1185 = vmax.f32 %v1169, 0.0
      %v1186 = vmax.f32 %v1170, 0.0
      %v1187 = vpack.c.bf16 %v1172, %v1171
      %v1188 = vpack.c.bf16 %v1174, %v1173
      %v1189 = vpack.c.bf16 %v1176, %v1175
      %v1190 = vpack.c.bf16 %v1178, %v1177
      %v1191 = vpack.c.bf16 %v1180, %v1179
      %v1192 = vpack.c.bf16 %v1182, %v1181
      %v1193 = vpack.c.bf16 %v1184, %v1183
      %v1194 = vpack.c.bf16 %v1186, %v1185
      %v1211 = vunpack.c.l.b16 %v283
      %v1212 = vunpack.c.l.b16 %v284
      %v1213 = vunpack.c.l.b16 %v285
      %v1214 = vunpack.c.l.b16 %v286
      %v1215 = vunpack.c.l.b16 %v287
      %v1216 = vunpack.c.l.b16 %v288
      %v1217 = vunpack.c.l.b16 %v289
      %v1218 = vunpack.c.l.b16 %v290
      %v1219 = vunpack.c.l.b16 %v291
      %v1220 = vunpack.c.l.b16 %v292
      %v1221 = vunpack.c.l.b16 %v293
      %v1222 = vunpack.c.l.b16 %v294
      %v1223 = vunpack.c.l.b16 %v295
      %v1224 = vunpack.c.l.b16 %v296
      %v1225 = vunpack.c.l.b16 %v297
      %v1226 = vunpack.c.l.b16 %v298
      %v1227 = vpack.c.b16 %v1212, %v1211
      %v1228 = vpack.c.b16 %v1214, %v1213
      %v1229 = vpack.c.b16 %v1216, %v1215
      %v1230 = vpack.c.b16 %v1218, %v1217
      %v1231 = vpack.c.b16 %v1220, %v1219
      %v1232 = vpack.c.b16 %v1222, %v1221
      %v1233 = vpack.c.b16 %v1224, %v1223
      %v1234 = vpack.c.b16 %v1226, %v1225
      %1243 = vmatprep.subr.bf16.mxu0 0
      %1244 = vmatpush1.bf16.msra.mxu0 %v1227
      %1245 = vmatprep.subr.bf16.mxu0 0
      %1246 = vmatpush1.bf16.msra.mxu0 %v1228
      %1247 = vmatprep.subr.bf16.mxu0 0
      %1248 = vmatpush1.bf16.msra.mxu0 %v1229
      %1249 = vmatprep.subr.bf16.mxu0 0
      %1250 = vmatpush1.bf16.msra.mxu0 %v1230
      %1251 = vmatprep.subr.bf16.mxu0 0
      %1252 = vmatpush1.bf16.msra.mxu0 %v1231
      %1253 = vmatprep.subr.bf16.mxu0 0
      %1254 = vmatpush1.bf16.msra.mxu0 %v1232
      %1255 = vmatprep.subr.bf16.mxu0 0
      %1256 = vmatpush1.bf16.msra.mxu0 %v1233
      %1257 = vmatprep.subr.bf16.mxu0 0
      %1258 = vmatpush1.bf16.msra.mxu0 %v1234
      %1259 = vmatprep.subr.bf16.mxu0 0
      %1260 = vmatpush1.bf16.msra.mxu0 0
      %1261 = vmatprep.subr.bf16.mxu0 0
      %1262 = vmatpush1.bf16.msra.mxu0 0
      %1263 = vmatprep.subr.bf16.mxu0 0
      %1264 = vmatpush1.bf16.msra.mxu0 0
      %1265 = vmatprep.subr.bf16.mxu0 0
      %1266 = vmatpush1.bf16.msra.mxu0 0
      %1267 = vmatprep.subr.bf16.mxu0 0
      %1268 = vmatpush1.bf16.msra.mxu0 0
      %1269 = vmatprep.subr.bf16.mxu0 0
      %1270 = vmatpush1.bf16.msra.mxu0 0
      %1271 = vmatprep.subr.bf16.mxu0 0
      %1272 = vmatpush1.bf16.msra.mxu0 0
      %1273 = vmatprep.subr.bf16.mxu0 0
      %1274 = vmatpush1.bf16.msra.mxu0 0
      %1275 = vmatprep.mubr.bf16.mxu0 0
      %1276 = vmatmul.mubr.bf16.gmra.mrb[0].mxu0 %v1187
      %v1277 = vpop.f32.mrb[0].mxu0
      %v1278 = vadd.f32 0.0, %v1277
      %v1279 = vpop.f32.mrb[0].mxu0
      %v1280 = vpop.f32.mrb[0].mxu0
      %v1281 = vadd.f32 0.0, %v1280
      %v1282 = vpop.f32.mrb[0].mxu0
      %1283 = vmatprep.mubr.bf16.mxu0 0
      %1284 = vmatmul.mubr.bf16.gmra.mrb[0].mxu0 %v1188
      %v1285 = vpop.f32.mrb[0].mxu0
      %v1286 = vadd.f32 0.0, %v1285
      %v1287 = vpop.f32.mrb[0].mxu0
      %v1288 = vpop.f32.mrb[0].mxu0
      %v1289 = vadd.f32 0.0, %v1288
      %v1290 = vpop.f32.mrb[0].mxu0
      %1291 = vmatprep.mubr.bf16.mxu0 0
      %1292 = vmatmul.mubr.bf16.gmra.mrb[0].mxu0 %v1189
      %v1293 = vpop.f32.mrb[0].mxu0
      %v1294 = vadd.f32 0.0, %v1293
      %v1295 = vpop.f32.mrb[0].mxu0
      %v1296 = vpop.f32.mrb[0].mxu0
      %v1297 = vadd.f32 0.0, %v1296
      %v1298 = vpop.f32.mrb[0].mxu0
      %1299 = vmatprep.mubr.bf16.mxu0 0
      %1300 = vmatmul.mubr.bf16.gmra.mrb[0].mxu0 %v1190
      %v1301 = vpop.f32.mrb[0].mxu0
      %v1302 = vadd.f32 0.0, %v1301
      %v1303 = vpop.f32.mrb[0].mxu0
      %v1304 = vpop.f32.mrb[0].mxu0
      %v1305 = vadd.f32 0.0, %v1304
      %v1306 = vpop.f32.mrb[0].mxu0
      %1307 = vmatprep.mubr.bf16.mxu0 0
      %1308 = vmatmul.mubr.bf16.gmra.mrb[0].mxu0 %v1191
      %v1309 = vpop.f32.mrb[0].mxu0
      %v1310 = vadd.f32 0.0, %v1309
      %v1311 = vpop.f32.mrb[0].mxu0
      %v1312 = vpop.f32.mrb[0].mxu0
      %v1313 = vadd.f32 0.0, %v1312
      %v1314 = vpop.f32.mrb[0].mxu0
      %1315 = vmatprep.mubr.bf16.mxu0 0
      %1316 = vmatmul.mubr.bf16.gmra.mrb[0].mxu0 %v1192
      %v1317 = vpop.f32.mrb[0].mxu0
      %v1318 = vadd.f32 0.0, %v1317
      %v1319 = vpop.f32.mrb[0].mxu0
      %v1320 = vpop.f32.mrb[0].mxu0
      %v1321 = vadd.f32 0.0, %v1320
      %v1322 = vpop.f32.mrb[0].mxu0
      %1323 = vmatprep.mubr.bf16.mxu0 0
      %1324 = vmatmul.mubr.bf16.gmra.mrb[0].mxu0 %v1193
      %v1325 = vpop.f32.mrb[0].mxu0
      %v1326 = vadd.f32 0.0, %v1325
      %v1327 = vpop.f32.mrb[0].mxu0
      %v1328 = vpop.f32.mrb[0].mxu0
      %v1329 = vadd.f32 0.0, %v1328
      %v1330 = vpop.f32.mrb[0].mxu0
      %1331 = vmatprep.mubr.bf16.mxu0 0
      %1332 = vmatmul.mubr.bf16.gmra.mrb[0].mxu0 %v1194
      %v1333 = vpop.f32.mrb[0].mxu0
      %v1334 = vadd.f32 0.0, %v1333
      %v1335 = vpop.f32.mrb[0].mxu0
      %v1336 = vpop.f32.mrb[0].mxu0
      %v1337 = vadd.f32 0.0, %v1336
      %v1338 = vpop.f32.mrb[0].mxu0
      %1339 = vdwg.mxu0
      %v1340 = vpack.c.bf16 %v1281, %v1278
      %v1341 = vpack.c.bf16 %v1289, %v1286
      %v1342 = vpack.c.bf16 %v1297, %v1294
      %v1343 = vpack.c.bf16 %v1305, %v1302
      %v1344 = vpack.c.bf16 %v1313, %v1310
      %v1345 = vpack.c.bf16 %v1321, %v1318
      %v1346 = vpack.c.bf16 %v1329, %v1326
      %v1347 = vpack.c.bf16 %v1337, %v1334
      %v1348 = vlaneseq
      %v1349 = vshrl.u32 %v1348, 7
      %v1350 = vsub.s32 0, %v1349
      %v1351 = vrot.slane %v349, %v1350
      %1352 = vmatprep.subr.bf16.mxu0 0
      %1353 = vmatpush1.bf16.msra.mxu0 %v1340
      %1354 = vmatprep.subr.bf16.mxu0 0
      %1355 = vmatpush1.bf16.msra.mxu0 %v1341
      %1356 = vmatprep.subr.bf16.mxu0 0
      %1357 = vmatpush1.bf16.msra.mxu0 %v1342
      %1358 = vmatprep.subr.bf16.mxu0 0
      %1359 = vmatpush1.bf16.msra.mxu0 %v1343
      %1360 = vmatprep.subr.bf16.mxu0 0
      %1361 = vmatpush1.bf16.msra.mxu0 %v1344
      %1362 = vmatprep.subr.bf16.mxu0 0
      %1363 = vmatpush1.bf16.msra.mxu0 %v1345
      %1364 = vmatprep.subr.bf16.mxu0 0
      %1365 = vmatpush1.bf16.msra.mxu0 %v1346
      %1366 = vmatprep.subr.bf16.mxu0 0
      %1367 = vmatpush1.bf16.msra.mxu0 %v1347
      %1368 = vmatprep.subr.bf16.mxu0 0
      %1369 = vmatpush1.bf16.msra.mxu0 0
      %1370 = vmatprep.subr.bf16.mxu0 0
      %1371 = vmatpush1.bf16.msra.mxu0 0
      %1372 = vmatprep.subr.bf16.mxu0 0
      %1373 = vmatpush1.bf16.msra.mxu0 0
      %1374 = vmatprep.subr.bf16.mxu0 0
      %1375 = vmatpush1.bf16.msra.mxu0 0
      %1376 = vmatprep.subr.bf16.mxu0 0
      %1377 = vmatpush1.bf16.msra.mxu0 0
      %1378 = vmatprep.subr.bf16.mxu0 0
      %1379 = vmatpush1.bf16.msra.mxu0 0
      %1380 = vmatprep.subr.bf16.mxu0 0
      %1381 = vmatpush1.bf16.msra.mxu0 0
      %1382 = vmatprep.subr.bf16.mxu0 0
      %1383 = vmatpush1.bf16.msra.mxu0 0
      %1384 = vmatprep.mubr.bf16.mxu0 0
      %1385 = vmatmul.mubr.bf16.gmra.mrb[0].mxu0 %v588
      %v1386 = vpop.f32.mrb[0].mxu0
      %v1387 = vadd.f32 %v1351, %v1386
      %v1388 = vpop.f32.mrb[0].mxu0
      %v1389 = vpop.f32.mrb[0].mxu0
      %v1390 = vadd.f32 %v1351, %v1389
      %v1391 = vpop.f32.mrb[0].mxu0
      %1392 = vmatprep.mubr.bf16.mxu0 0
      %1393 = vmatmul.mubr.bf16.gmra.mrb[0].mxu0 %v589
      %v1394 = vpop.f32.mrb[0].mxu0
      %v1395 = vadd.f32 %v1351, %v1394
      %v1396 = vpop.f32.mrb[0].mxu0
      %v1397 = vpop.f32.mrb[0].mxu0
      %v1398 = vadd.f32 %v1351, %v1397
      %v1399 = vpop.f32.mrb[0].mxu0
      %1400 = vmatprep.mubr.bf16.mxu0 0
      %1401 = vmatmul.mubr.bf16.gmra.mrb[0].mxu0 %v590
      %v1402 = vpop.f32.mrb[0].mxu0
      %v1403 = vadd.f32 %v1351, %v1402
      %v1404 = vpop.f32.mrb[0].mxu0
      %v1405 = vpop.f32.mrb[0].mxu0
      %v1406 = vadd.f32 %v1351, %v1405
      %v1407 = vpop.f32.mrb[0].mxu0
      %1408 = vmatprep.mubr.bf16.mxu0 0
      %1409 = vmatmul.mubr.bf16.gmra.mrb[0].mxu0 %v591
      %v1410 = vpop.f32.mrb[0].mxu0
      %v1411 = vadd.f32 %v1351, %v1410
      %v1412 = vpop.f32.mrb[0].mxu0
      %v1413 = vpop.f32.mrb[0].mxu0
      %v1414 = vadd.f32 %v1351, %v1413
      %v1415 = vpop.f32.mrb[0].mxu0
      %1416 = vmatprep.mubr.bf16.mxu0 0
      %1417 = vmatmul.mubr.bf16.gmra.mrb[0].mxu0 %v592
      %v1418 = vpop.f32.mrb[0].mxu0
      %v1419 = vadd.f32 %v1351, %v1418
      %v1420 = vpop.f32.mrb[0].mxu0
      %v1421 = vpop.f32.mrb[0].mxu0
      %v1422 = vadd.f32 %v1351, %v1421
      %v1423 = vpop.f32.mrb[0].mxu0
      %1424 = vmatprep.mubr.bf16.mxu0 0
      %1425 = vmatmul.mubr.bf16.gmra.mrb[0].mxu0 %v593
      %v1426 = vpop.f32.mrb[0].mxu0
      %v1427 = vadd.f32 %v1351, %v1426
      %v1428 = vpop.f32.mrb[0].mxu0
      %v1429 = vpop.f32.mrb[0].mxu0
      %v1430 = vadd.f32 %v1351, %v1429
      %v1431 = vpop.f32.mrb[0].mxu0
      %1432 = vmatprep.mubr.bf16.mxu0 0
      %1433 = vmatmul.mubr.bf16.gmra.mrb[0].mxu0 %v594
      %v1434 = vpop.f32.mrb[0].mxu0
      %v1435 = vadd.f32 %v1351, %v1434
      %v1436 = vpop.f32.mrb[0].mxu0
      %v1437 = vpop.f32.mrb[0].mxu0
      %v1438 = vadd.f32 %v1351, %v1437
      %v1439 = vpop.f32.mrb[0].mxu0
      %1440 = vmatprep.mubr.bf16.mxu0 0
      %1441 = vmatmul.mubr.bf16.gmra.mrb[0].mxu0 %v595
      %v1442 = vpop.f32.mrb[0].mxu0
      %v1443 = vadd.f32 %v1351, %v1442
      %v1444 = vpop.f32.mrb[0].mxu0
      %v1445 = vpop.f32.mrb[0].mxu0
      %v1446 = vadd.f32 %v1351, %v1445
      %v1447 = vpop.f32.mrb[0].mxu0
      %1448 = vdwg.mxu0
      %v1449 = vmul.f32 %v1387, %v1387
      %v1450 = vmul.f32 %v1390, %v1390
      %v1451 = vmul.f32 %v1395, %v1395
      %v1452 = vmul.f32 %v1398, %v1398
      %v1453 = vmul.f32 %v1403, %v1403
      %v1454 = vmul.f32 %v1406, %v1406
      %v1455 = vmul.f32 %v1411, %v1411
      %v1456 = vmul.f32 %v1414, %v1414
      %v1457 = vmul.f32 %v1419, %v1419
      %v1458 = vmul.f32 %v1422, %v1422
      %v1459 = vmul.f32 %v1427, %v1427
      %v1460 = vmul.f32 %v1430, %v1430
      %v1461 = vmul.f32 %v1435, %v1435
      %v1462 = vmul.f32 %v1438, %v1438
      %v1463 = vmul.f32 %v1443, %v1443
      %v1464 = vmul.f32 %v1446, %v1446
      %1465 = vadd.xlane.f32.xlu0 %v1449
      %v1466 = vpop.xlane.xlu0 %1465
      %1467 = vadd.xlane.f32.xlu0 %v1450
      %v1468 = vpop.xlane.xlu0 %1467
      %1469 = vadd.xlane.f32.xlu0 %v1451
      %v1470 = vpop.xlane.xlu0 %1469
      %1471 = vadd.xlane.f32.xlu0 %v1452
      %v1472 = vpop.xlane.xlu0 %1471
      %1473 = vadd.xlane.f32.xlu0 %v1453
      %v1474 = vpop.xlane.xlu0 %1473
      %1475 = vadd.xlane.f32.xlu0 %v1454
      %v1476 = vpop.xlane.xlu0 %1475
      %1477 = vadd.xlane.f32.xlu0 %v1455
      %v1478 = vpop.xlane.xlu0 %1477
      %1479 = vadd.xlane.f32.xlu0 %v1456
      %v1480 = vpop.xlane.xlu0 %1479
      %1481 = vadd.xlane.f32.xlu0 %v1457
      %v1482 = vpop.xlane.xlu0 %1481
      %1483 = vadd.xlane.f32.xlu0 %v1458
      %v1484 = vpop.xlane.xlu0 %1483
      %1485 = vadd.xlane.f32.xlu0 %v1459
      %v1486 = vpop.xlane.xlu0 %1485
      %1487 = vadd.xlane.f32.xlu0 %v1460
      %v1488 = vpop.xlane.xlu0 %1487
      %1489 = vadd.xlane.f32.xlu0 %v1461
      %v1490 = vpop.xlane.xlu0 %1489
      %1491 = vadd.xlane.f32.xlu0 %v1462
      %v1492 = vpop.xlane.xlu0 %1491
      %1493 = vadd.xlane.f32.xlu0 %v1463
      %v1494 = vpop.xlane.xlu0 %1493
      %1495 = vadd.xlane.f32.xlu0 %v1464
      %v1496 = vpop.xlane.xlu0 %1495
      %v1497 = vmax.f32 %v1466, 1e-24
      %v1498 = vmax.f32 %v1468, 1e-24
      %v1499 = vmax.f32 %v1470, 1e-24
      %v1500 = vmax.f32 %v1472, 1e-24
      %v1501 = vmax.f32 %v1474, 1e-24
      %v1502 = vmax.f32 %v1476, 1e-24
      %v1503 = vmax.f32 %v1478, 1e-24
      %v1504 = vmax.f32 %v1480, 1e-24
      %v1505 = vmax.f32 %v1482, 1e-24
      %v1506 = vmax.f32 %v1484, 1e-24
      %v1507 = vmax.f32 %v1486, 1e-24
      %v1508 = vmax.f32 %v1488, 1e-24
      %v1509 = vmax.f32 %v1490, 1e-24
      %v1510 = vmax.f32 %v1492, 1e-24
      %v1511 = vmax.f32 %v1494, 1e-24
      %v1512 = vmax.f32 %v1496, 1e-24
      %v1513 = vrsqrt.pop %v1497
      %v1514 = vrsqrt.pop %v1498
      %v1515 = vrsqrt.pop %v1499
      %v1516 = vrsqrt.pop %v1500
      %v1517 = vrsqrt.pop %v1501
      %v1518 = vrsqrt.pop %v1502
      %v1519 = vrsqrt.pop %v1503
      %v1520 = vrsqrt.pop %v1504
      %v1521 = vrsqrt.pop %v1505
      %v1522 = vrsqrt.pop %v1506
      %v1523 = vrsqrt.pop %v1507
      %v1524 = vrsqrt.pop %v1508
      %v1525 = vrsqrt.pop %v1509
      %v1526 = vrsqrt.pop %v1510
      %v1527 = vrsqrt.pop %v1511
      %v1528 = vrsqrt.pop %v1512
      %v1529 = vmul.f32 %v1387, %v1513
      %v1530 = vmul.f32 %v1390, %v1514
      %v1531 = vmul.f32 %v1395, %v1515
      %v1532 = vmul.f32 %v1398, %v1516
      %v1533 = vmul.f32 %v1403, %v1517
      %v1534 = vmul.f32 %v1406, %v1518
      %v1535 = vmul.f32 %v1411, %v1519
      %v1536 = vmul.f32 %v1414, %v1520
      %v1537 = vmul.f32 %v1419, %v1521
      %v1538 = vmul.f32 %v1422, %v1522
      %v1539 = vmul.f32 %v1427, %v1523
      %v1540 = vmul.f32 %v1430, %v1524
      %v1541 = vmul.f32 %v1435, %v1525
      %v1542 = vmul.f32 %v1438, %v1526
      %v1543 = vmul.f32 %v1443, %v1527
      %v1544 = vmul.f32 %v1446, %v1528
      %v1545 = vmax.f32 %v1529, 0.0
      %v1546 = vmax.f32 %v1530, 0.0
      %v1547 = vmax.f32 %v1531, 0.0
      %v1548 = vmax.f32 %v1532, 0.0
      %v1549 = vmax.f32 %v1533, 0.0
      %v1550 = vmax.f32 %v1534, 0.0
      %v1551 = vmax.f32 %v1535, 0.0
      %v1552 = vmax.f32 %v1536, 0.0
      %v1553 = vmax.f32 %v1537, 0.0
      %v1554 = vmax.f32 %v1538, 0.0
      %v1555 = vmax.f32 %v1539, 0.0
      %v1556 = vmax.f32 %v1540, 0.0
      %v1557 = vmax.f32 %v1541, 0.0
      %v1558 = vmax.f32 %v1542, 0.0
      %v1559 = vmax.f32 %v1543, 0.0
      %v1560 = vmax.f32 %v1544, 0.0
      %v1561 = vpack.c.bf16 %v1546, %v1545
      %v1562 = vpack.c.bf16 %v1548, %v1547
      %v1563 = vpack.c.bf16 %v1550, %v1549
      %v1564 = vpack.c.bf16 %v1552, %v1551
      %v1565 = vpack.c.bf16 %v1554, %v1553
      %v1566 = vpack.c.bf16 %v1556, %v1555
      %v1567 = vpack.c.bf16 %v1558, %v1557
      %v1568 = vpack.c.bf16 %v1560, %v1559
      %v1585 = vunpack.c.l.b16 %v315
      %v1586 = vunpack.c.l.b16 %v316
      %v1587 = vunpack.c.l.b16 %v317
      %v1588 = vunpack.c.l.b16 %v318
      %v1589 = vunpack.c.l.b16 %v319
      %v1590 = vunpack.c.l.b16 %v320
      %v1591 = vunpack.c.l.b16 %v321
      %v1592 = vunpack.c.l.b16 %v322
      %v1593 = vunpack.c.l.b16 %v323
      %v1594 = vunpack.c.l.b16 %v324
      %v1595 = vunpack.c.l.b16 %v325
      %v1596 = vunpack.c.l.b16 %v326
      %v1597 = vunpack.c.l.b16 %v327
      %v1598 = vunpack.c.l.b16 %v328
      %v1599 = vunpack.c.l.b16 %v329
      %v1600 = vunpack.c.l.b16 %v330
      %v1601 = vpack.c.b16 %v1586, %v1585
      %v1602 = vpack.c.b16 %v1588, %v1587
      %v1603 = vpack.c.b16 %v1590, %v1589
      %v1604 = vpack.c.b16 %v1592, %v1591
      %v1605 = vpack.c.b16 %v1594, %v1593
      %v1606 = vpack.c.b16 %v1596, %v1595
      %v1607 = vpack.c.b16 %v1598, %v1597
      %v1608 = vpack.c.b16 %v1600, %v1599
      %1617 = vmatprep.subr.bf16.mxu0 0
      %1618 = vmatpush1.bf16.msra.mxu0 %v1601
      %1619 = vmatprep.subr.bf16.mxu0 0
      %1620 = vmatpush1.bf16.msra.mxu0 %v1602
      %1621 = vmatprep.subr.bf16.mxu0 0
      %1622 = vmatpush1.bf16.msra.mxu0 %v1603
      %1623 = vmatprep.subr.bf16.mxu0 0
      %1624 = vmatpush1.bf16.msra.mxu0 %v1604
      %1625 = vmatprep.subr.bf16.mxu0 0
      %1626 = vmatpush1.bf16.msra.mxu0 %v1605
      %1627 = vmatprep.subr.bf16.mxu0 0
      %1628 = vmatpush1.bf16.msra.mxu0 %v1606
      %1629 = vmatprep.subr.bf16.mxu0 0
      %1630 = vmatpush1.bf16.msra.mxu0 %v1607
      %1631 = vmatprep.subr.bf16.mxu0 0
      %1632 = vmatpush1.bf16.msra.mxu0 %v1608
      %1633 = vmatprep.subr.bf16.mxu0 0
      %1634 = vmatpush1.bf16.msra.mxu0 0
      %1635 = vmatprep.subr.bf16.mxu0 0
      %1636 = vmatpush1.bf16.msra.mxu0 0
      %1637 = vmatprep.subr.bf16.mxu0 0
      %1638 = vmatpush1.bf16.msra.mxu0 0
      %1639 = vmatprep.subr.bf16.mxu0 0
      %1640 = vmatpush1.bf16.msra.mxu0 0
      %1641 = vmatprep.subr.bf16.mxu0 0
      %1642 = vmatpush1.bf16.msra.mxu0 0
      %1643 = vmatprep.subr.bf16.mxu0 0
      %1644 = vmatpush1.bf16.msra.mxu0 0
      %1645 = vmatprep.subr.bf16.mxu0 0
      %1646 = vmatpush1.bf16.msra.mxu0 0
      %1647 = vmatprep.subr.bf16.mxu0 0
      %1648 = vmatpush1.bf16.msra.mxu0 0
      %1649 = vmatprep.mubr.bf16.mxu0 0
      %1650 = vmatmul.mubr.bf16.gmra.mrb[0].mxu0 %v1187
      %v1651 = vpop.f32.mrb[0].mxu0
      %v1652 = vadd.f32 0.0, %v1651
      %v1653 = vpop.f32.mrb[0].mxu0
      %v1654 = vpop.f32.mrb[0].mxu0
      %v1655 = vadd.f32 0.0, %v1654
      %v1656 = vpop.f32.mrb[0].mxu0
      %1657 = vmatprep.mubr.bf16.mxu0 0
      %1658 = vmatmul.mubr.bf16.gmra.mrb[0].mxu0 %v1188
      %v1659 = vpop.f32.mrb[0].mxu0
      %v1660 = vadd.f32 0.0, %v1659
      %v1661 = vpop.f32.mrb[0].mxu0
      %v1662 = vpop.f32.mrb[0].mxu0
      %v1663 = vadd.f32 0.0, %v1662
      %v1664 = vpop.f32.mrb[0].mxu0
      %1665 = vmatprep.mubr.bf16.mxu0 0
      %1666 = vmatmul.mubr.bf16.gmra.mrb[0].mxu0 %v1189
      %v1667 = vpop.f32.mrb[0].mxu0
      %v1668 = vadd.f32 0.0, %v1667
      %v1669 = vpop.f32.mrb[0].mxu0
      %v1670 = vpop.f32.mrb[0].mxu0
      %v1671 = vadd.f32 0.0, %v1670
      %v1672 = vpop.f32.mrb[0].mxu0
      %1673 = vmatprep.mubr.bf16.mxu0 0
      %1674 = vmatmul.mubr.bf16.gmra.mrb[0].mxu0 %v1190
      %v1675 = vpop.f32.mrb[0].mxu0
      %v1676 = vadd.f32 0.0, %v1675
      %v1677 = vpop.f32.mrb[0].mxu0
      %v1678 = vpop.f32.mrb[0].mxu0
      %v1679 = vadd.f32 0.0, %v1678
      %v1680 = vpop.f32.mrb[0].mxu0
      %1681 = vmatprep.mubr.bf16.mxu0 0
      %1682 = vmatmul.mubr.bf16.gmra.mrb[0].mxu0 %v1191
      %v1683 = vpop.f32.mrb[0].mxu0
      %v1684 = vadd.f32 0.0, %v1683
      %v1685 = vpop.f32.mrb[0].mxu0
      %v1686 = vpop.f32.mrb[0].mxu0
      %v1687 = vadd.f32 0.0, %v1686
      %v1688 = vpop.f32.mrb[0].mxu0
      %1689 = vmatprep.mubr.bf16.mxu0 0
      %1690 = vmatmul.mubr.bf16.gmra.mrb[0].mxu0 %v1192
      %v1691 = vpop.f32.mrb[0].mxu0
      %v1692 = vadd.f32 0.0, %v1691
      %v1693 = vpop.f32.mrb[0].mxu0
      %v1694 = vpop.f32.mrb[0].mxu0
      %v1695 = vadd.f32 0.0, %v1694
      %v1696 = vpop.f32.mrb[0].mxu0
      %1697 = vmatprep.mubr.bf16.mxu0 0
      %1698 = vmatmul.mubr.bf16.gmra.mrb[0].mxu0 %v1193
      %v1699 = vpop.f32.mrb[0].mxu0
      %v1700 = vadd.f32 0.0, %v1699
      %v1701 = vpop.f32.mrb[0].mxu0
      %v1702 = vpop.f32.mrb[0].mxu0
      %v1703 = vadd.f32 0.0, %v1702
      %v1704 = vpop.f32.mrb[0].mxu0
      %1705 = vmatprep.mubr.bf16.mxu0 0
      %1706 = vmatmul.mubr.bf16.gmra.mrb[0].mxu0 %v1194
      %v1707 = vpop.f32.mrb[0].mxu0
      %v1708 = vadd.f32 0.0, %v1707
      %v1709 = vpop.f32.mrb[0].mxu0
      %v1710 = vpop.f32.mrb[0].mxu0
      %v1711 = vadd.f32 0.0, %v1710
      %v1712 = vpop.f32.mrb[0].mxu0
      %1713 = vdwg.mxu0
      %v1730 = vunpack.c.l.b16 %v299
      %v1731 = vunpack.c.l.b16 %v300
      %v1732 = vunpack.c.l.b16 %v301
      %v1733 = vunpack.c.l.b16 %v302
      %v1734 = vunpack.c.l.b16 %v303
      %v1735 = vunpack.c.l.b16 %v304
      %v1736 = vunpack.c.l.b16 %v305
      %v1737 = vunpack.c.l.b16 %v306
      %v1738 = vunpack.c.l.b16 %v307
      %v1739 = vunpack.c.l.b16 %v308
      %v1740 = vunpack.c.l.b16 %v309
      %v1741 = vunpack.c.l.b16 %v310
      %v1742 = vunpack.c.l.b16 %v311
      %v1743 = vunpack.c.l.b16 %v312
      %v1744 = vunpack.c.l.b16 %v313
      %v1745 = vunpack.c.l.b16 %v314
      %v1746 = vpack.c.b16 %v1731, %v1730
      %v1747 = vpack.c.b16 %v1733, %v1732
      %v1748 = vpack.c.b16 %v1735, %v1734
      %v1749 = vpack.c.b16 %v1737, %v1736
      %v1750 = vpack.c.b16 %v1739, %v1738
      %v1751 = vpack.c.b16 %v1741, %v1740
      %v1752 = vpack.c.b16 %v1743, %v1742
      %v1753 = vpack.c.b16 %v1745, %v1744
      %1762 = vmatprep.subr.bf16.mxu0 0
      %1763 = vmatpush1.bf16.msra.mxu0 %v1746
      %1764 = vmatprep.subr.bf16.mxu0 0
      %1765 = vmatpush1.bf16.msra.mxu0 %v1747
      %1766 = vmatprep.subr.bf16.mxu0 0
      %1767 = vmatpush1.bf16.msra.mxu0 %v1748
      %1768 = vmatprep.subr.bf16.mxu0 0
      %1769 = vmatpush1.bf16.msra.mxu0 %v1749
      %1770 = vmatprep.subr.bf16.mxu0 0
      %1771 = vmatpush1.bf16.msra.mxu0 %v1750
      %1772 = vmatprep.subr.bf16.mxu0 0
      %1773 = vmatpush1.bf16.msra.mxu0 %v1751
      %1774 = vmatprep.subr.bf16.mxu0 0
      %1775 = vmatpush1.bf16.msra.mxu0 %v1752
      %1776 = vmatprep.subr.bf16.mxu0 0
      %1777 = vmatpush1.bf16.msra.mxu0 %v1753
      %1778 = vmatprep.subr.bf16.mxu0 0
      %1779 = vmatpush1.bf16.msra.mxu0 0
      %1780 = vmatprep.subr.bf16.mxu0 0
      %1781 = vmatpush1.bf16.msra.mxu0 0
      %1782 = vmatprep.subr.bf16.mxu0 0
      %1783 = vmatpush1.bf16.msra.mxu0 0
      %1784 = vmatprep.subr.bf16.mxu0 0
      %1785 = vmatpush1.bf16.msra.mxu0 0
      %1786 = vmatprep.subr.bf16.mxu0 0
      %1787 = vmatpush1.bf16.msra.mxu0 0
      %1788 = vmatprep.subr.bf16.mxu0 0
      %1789 = vmatpush1.bf16.msra.mxu0 0
      %1790 = vmatprep.subr.bf16.mxu0 0
      %1791 = vmatpush1.bf16.msra.mxu0 0
      %1792 = vmatprep.subr.bf16.mxu0 0
      %1793 = vmatpush1.bf16.msra.mxu0 0
      %1794 = vmatprep.mubr.bf16.mxu0 0
      %1795 = vmatmul.mubr.bf16.gmra.mrb[0].mxu0 %v813
      %v1796 = vpop.f32.mrb[0].mxu0
      %v1797 = vadd.f32 %v1652, %v1796
      %v1798 = vpop.f32.mrb[0].mxu0
      %v1799 = vpop.f32.mrb[0].mxu0
      %v1800 = vadd.f32 %v1655, %v1799
      %v1801 = vpop.f32.mrb[0].mxu0
      %1802 = vmatprep.mubr.bf16.mxu0 0
      %1803 = vmatmul.mubr.bf16.gmra.mrb[0].mxu0 %v814
      %v1804 = vpop.f32.mrb[0].mxu0
      %v1805 = vadd.f32 %v1660, %v1804
      %v1806 = vpop.f32.mrb[0].mxu0
      %v1807 = vpop.f32.mrb[0].mxu0
      %v1808 = vadd.f32 %v1663, %v1807
      %v1809 = vpop.f32.mrb[0].mxu0
      %1810 = vmatprep.mubr.bf16.mxu0 0
      %1811 = vmatmul.mubr.bf16.gmra.mrb[0].mxu0 %v815
      %v1812 = vpop.f32.mrb[0].mxu0
      %v1813 = vadd.f32 %v1668, %v1812
      %v1814 = vpop.f32.mrb[0].mxu0
      %v1815 = vpop.f32.mrb[0].mxu0
      %v1816 = vadd.f32 %v1671, %v1815
      %v1817 = vpop.f32.mrb[0].mxu0
      %1818 = vmatprep.mubr.bf16.mxu0 0
      %1819 = vmatmul.mubr.bf16.gmra.mrb[0].mxu0 %v816
      %v1820 = vpop.f32.mrb[0].mxu0
      %v1821 = vadd.f32 %v1676, %v1820
      %v1822 = vpop.f32.mrb[0].mxu0
      %v1823 = vpop.f32.mrb[0].mxu0
      %v1824 = vadd.f32 %v1679, %v1823
      %v1825 = vpop.f32.mrb[0].mxu0
      %1826 = vmatprep.mubr.bf16.mxu0 0
      %1827 = vmatmul.mubr.bf16.gmra.mrb[0].mxu0 %v817
      %v1828 = vpop.f32.mrb[0].mxu0
      %v1829 = vadd.f32 %v1684, %v1828
      %v1830 = vpop.f32.mrb[0].mxu0
      %v1831 = vpop.f32.mrb[0].mxu0
      %v1832 = vadd.f32 %v1687, %v1831
      %v1833 = vpop.f32.mrb[0].mxu0
      %1834 = vmatprep.mubr.bf16.mxu0 0
      %1835 = vmatmul.mubr.bf16.gmra.mrb[0].mxu0 %v818
      %v1836 = vpop.f32.mrb[0].mxu0
      %v1837 = vadd.f32 %v1692, %v1836
      %v1838 = vpop.f32.mrb[0].mxu0
      %v1839 = vpop.f32.mrb[0].mxu0
      %v1840 = vadd.f32 %v1695, %v1839
      %v1841 = vpop.f32.mrb[0].mxu0
      %1842 = vmatprep.mubr.bf16.mxu0 0
      %1843 = vmatmul.mubr.bf16.gmra.mrb[0].mxu0 %v819
      %v1844 = vpop.f32.mrb[0].mxu0
      %v1845 = vadd.f32 %v1700, %v1844
      %v1846 = vpop.f32.mrb[0].mxu0
      %v1847 = vpop.f32.mrb[0].mxu0
      %v1848 = vadd.f32 %v1703, %v1847
      %v1849 = vpop.f32.mrb[0].mxu0
      %1850 = vmatprep.mubr.bf16.mxu0 0
      %1851 = vmatmul.mubr.bf16.gmra.mrb[0].mxu0 %v820
      %v1852 = vpop.f32.mrb[0].mxu0
      %v1853 = vadd.f32 %v1708, %v1852
      %v1854 = vpop.f32.mrb[0].mxu0
      %v1855 = vpop.f32.mrb[0].mxu0
      %v1856 = vadd.f32 %v1711, %v1855
      %v1857 = vpop.f32.mrb[0].mxu0
      %1858 = vdwg.mxu0
      %v1875 = vunpack.c.l.b16 %v331
      %v1876 = vunpack.c.l.b16 %v332
      %v1877 = vunpack.c.l.b16 %v333
      %v1878 = vunpack.c.l.b16 %v334
      %v1879 = vunpack.c.l.b16 %v335
      %v1880 = vunpack.c.l.b16 %v336
      %v1881 = vunpack.c.l.b16 %v337
      %v1882 = vunpack.c.l.b16 %v338
      %v1883 = vunpack.c.l.b16 %v339
      %v1884 = vunpack.c.l.b16 %v340
      %v1885 = vunpack.c.l.b16 %v341
      %v1886 = vunpack.c.l.b16 %v342
      %v1887 = vunpack.c.l.b16 %v343
      %v1888 = vunpack.c.l.b16 %v344
      %v1889 = vunpack.c.l.b16 %v345
      %v1890 = vunpack.c.l.b16 %v346
      %v1891 = vpack.c.b16 %v1876, %v1875
      %v1892 = vpack.c.b16 %v1878, %v1877
      %v1893 = vpack.c.b16 %v1880, %v1879
      %v1894 = vpack.c.b16 %v1882, %v1881
      %v1895 = vpack.c.b16 %v1884, %v1883
      %v1896 = vpack.c.b16 %v1886, %v1885
      %v1897 = vpack.c.b16 %v1888, %v1887
      %v1898 = vpack.c.b16 %v1890, %v1889
      %1907 = vmatprep.subr.bf16.mxu0 0
      %1908 = vmatpush1.bf16.msra.mxu0 %v1891
      %1909 = vmatprep.subr.bf16.mxu0 0
      %1910 = vmatpush1.bf16.msra.mxu0 %v1892
      %1911 = vmatprep.subr.bf16.mxu0 0
      %1912 = vmatpush1.bf16.msra.mxu0 %v1893
      %1913 = vmatprep.subr.bf16.mxu0 0
      %1914 = vmatpush1.bf16.msra.mxu0 %v1894
      %1915 = vmatprep.subr.bf16.mxu0 0
      %1916 = vmatpush1.bf16.msra.mxu0 %v1895
      %1917 = vmatprep.subr.bf16.mxu0 0
      %1918 = vmatpush1.bf16.msra.mxu0 %v1896
      %1919 = vmatprep.subr.bf16.mxu0 0
      %1920 = vmatpush1.bf16.msra.mxu0 %v1897
      %1921 = vmatprep.subr.bf16.mxu0 0
      %1922 = vmatpush1.bf16.msra.mxu0 %v1898
      %1923 = vmatprep.subr.bf16.mxu0 0
      %1924 = vmatpush1.bf16.msra.mxu0 0
      %1925 = vmatprep.subr.bf16.mxu0 0
      %1926 = vmatpush1.bf16.msra.mxu0 0
      %1927 = vmatprep.subr.bf16.mxu0 0
      %1928 = vmatpush1.bf16.msra.mxu0 0
      %1929 = vmatprep.subr.bf16.mxu0 0
      %1930 = vmatpush1.bf16.msra.mxu0 0
      %1931 = vmatprep.subr.bf16.mxu0 0
      %1932 = vmatpush1.bf16.msra.mxu0 0
      %1933 = vmatprep.subr.bf16.mxu0 0
      %1934 = vmatpush1.bf16.msra.mxu0 0
      %1935 = vmatprep.subr.bf16.mxu0 0
      %1936 = vmatpush1.bf16.msra.mxu0 0
      %1937 = vmatprep.subr.bf16.mxu0 0
      %1938 = vmatpush1.bf16.msra.mxu0 0
      %1939 = vmatprep.mubr.bf16.mxu0 0
      %1940 = vmatmul.mubr.bf16.gmra.mrb[0].mxu0 %v1561
      %v1941 = vpop.f32.mrb[0].mxu0
      %v1942 = vadd.f32 0.0, %v1941
      %v1943 = vpop.f32.mrb[0].mxu0
      %v1944 = vpop.f32.mrb[0].mxu0
      %v1945 = vadd.f32 0.0, %v1944
      %v1946 = vpop.f32.mrb[0].mxu0
      %1947 = vmatprep.mubr.bf16.mxu0 0
      %1948 = vmatmul.mubr.bf16.gmra.mrb[0].mxu0 %v1562
      %v1949 = vpop.f32.mrb[0].mxu0
      %v1950 = vadd.f32 0.0, %v1949
      %v1951 = vpop.f32.mrb[0].mxu0
      %v1952 = vpop.f32.mrb[0].mxu0
      %v1953 = vadd.f32 0.0, %v1952
      %v1954 = vpop.f32.mrb[0].mxu0
      %1955 = vmatprep.mubr.bf16.mxu0 0
      %1956 = vmatmul.mubr.bf16.gmra.mrb[0].mxu0 %v1563
      %v1957 = vpop.f32.mrb[0].mxu0
      %v1958 = vadd.f32 0.0, %v1957
      %v1959 = vpop.f32.mrb[0].mxu0
      %v1960 = vpop.f32.mrb[0].mxu0
      %v1961 = vadd.f32 0.0, %v1960
      %v1962 = vpop.f32.mrb[0].mxu0
      %1963 = vmatprep.mubr.bf16.mxu0 0
      %1964 = vmatmul.mubr.bf16.gmra.mrb[0].mxu0 %v1564
      %v1965 = vpop.f32.mrb[0].mxu0
      %v1966 = vadd.f32 0.0, %v1965
      %v1967 = vpop.f32.mrb[0].mxu0
      %v1968 = vpop.f32.mrb[0].mxu0
      %v1969 = vadd.f32 0.0, %v1968
      %v1970 = vpop.f32.mrb[0].mxu0
      %1971 = vmatprep.mubr.bf16.mxu0 0
      %1972 = vmatmul.mubr.bf16.gmra.mrb[0].mxu0 %v1565
      %v1973 = vpop.f32.mrb[0].mxu0
      %v1974 = vadd.f32 0.0, %v1973
      %v1975 = vpop.f32.mrb[0].mxu0
      %v1976 = vpop.f32.mrb[0].mxu0
      %v1977 = vadd.f32 0.0, %v1976
      %v1978 = vpop.f32.mrb[0].mxu0
      %1979 = vmatprep.mubr.bf16.mxu0 0
      %1980 = vmatmul.mubr.bf16.gmra.mrb[0].mxu0 %v1566
      %v1981 = vpop.f32.mrb[0].mxu0
      %v1982 = vadd.f32 0.0, %v1981
      %v1983 = vpop.f32.mrb[0].mxu0
      %v1984 = vpop.f32.mrb[0].mxu0
      %v1985 = vadd.f32 0.0, %v1984
      %v1986 = vpop.f32.mrb[0].mxu0
      %1987 = vmatprep.mubr.bf16.mxu0 0
      %1988 = vmatmul.mubr.bf16.gmra.mrb[0].mxu0 %v1567
      %v1989 = vpop.f32.mrb[0].mxu0
      %v1990 = vadd.f32 0.0, %v1989
      %v1991 = vpop.f32.mrb[0].mxu0
      %v1992 = vpop.f32.mrb[0].mxu0
      %v1993 = vadd.f32 0.0, %v1992
      %v1994 = vpop.f32.mrb[0].mxu0
      %1995 = vmatprep.mubr.bf16.mxu0 0
      %1996 = vmatmul.mubr.bf16.gmra.mrb[0].mxu0 %v1568
      %v1997 = vpop.f32.mrb[0].mxu0
      %v1998 = vadd.f32 0.0, %v1997
      %v1999 = vpop.f32.mrb[0].mxu0
      %v2000 = vpop.f32.mrb[0].mxu0
      %v2001 = vadd.f32 0.0, %v2000
      %v2002 = vpop.f32.mrb[0].mxu0
      %2003 = vdwg.mxu0
      %v2004 = vadd.f32 %v1797, %v1942
      %v2005 = vadd.f32 %v1800, %v1945
      %v2006 = vadd.f32 %v1805, %v1950
      %v2007 = vadd.f32 %v1808, %v1953
      %v2008 = vadd.f32 %v1813, %v1958
      %v2009 = vadd.f32 %v1816, %v1961
      %v2010 = vadd.f32 %v1821, %v1966
      %v2011 = vadd.f32 %v1824, %v1969
      %v2012 = vadd.f32 %v1829, %v1974
      %v2013 = vadd.f32 %v1832, %v1977
      %v2014 = vadd.f32 %v1837, %v1982
      %v2015 = vadd.f32 %v1840, %v1985
      %v2016 = vadd.f32 %v1845, %v1990
      %v2017 = vadd.f32 %v1848, %v1993
      %v2018 = vadd.f32 %v1853, %v1998
      %v2019 = vadd.f32 %v1856, %v2001
      %v2020 = vlaneseq
      %v2021 = vshrl.u32 %v2020, 7
      %v2022 = vsub.s32 0, %v2021
      %v2023 = vrot.slane %v350, %v2022
      %v2024 = vadd.f32 %v2004, %v2023
      %v2025 = vadd.f32 %v2005, %v2023
      %v2026 = vadd.f32 %v2006, %v2023
      %v2027 = vadd.f32 %v2007, %v2023
      %v2028 = vadd.f32 %v2008, %v2023
      %v2029 = vadd.f32 %v2009, %v2023
      %v2030 = vadd.f32 %v2010, %v2023
      %v2031 = vadd.f32 %v2011, %v2023
      %v2032 = vadd.f32 %v2012, %v2023
      %v2033 = vadd.f32 %v2013, %v2023
      %v2034 = vadd.f32 %v2014, %v2023
      %v2035 = vadd.f32 %v2015, %v2023
      %v2036 = vadd.f32 %v2016, %v2023
      %v2037 = vadd.f32 %v2017, %v2023
      %v2038 = vadd.f32 %v2018, %v2023
      %v2039 = vadd.f32 %v2019, %v2023
      %2040 = vst [vmem:[%s217] sm:$0xff] %v2024
      %2041 = vst [vmem:[%s217 + $0x8] sm:$0xff] %v2025
      %2042 = vst [vmem:[%s217 + $0x10] sm:$0xff] %v2026
      %2043 = vst [vmem:[%s217 + $0x18] sm:$0xff] %v2027
      %2044 = vst [vmem:[%s217 + $0x20] sm:$0xff] %v2028
      %2045 = vst [vmem:[%s217 + $0x28] sm:$0xff] %v2029
      %2046 = vst [vmem:[%s217 + $0x30] sm:$0xff] %v2030
      %2047 = vst [vmem:[%s217 + $0x38] sm:$0xff] %v2031
      %2048 = vst [vmem:[%s217 + $0x40] sm:$0xff] %v2032
      %2049 = vst [vmem:[%s217 + $0x48] sm:$0xff] %v2033
      %2050 = vst [vmem:[%s217 + $0x50] sm:$0xff] %v2034
      %2051 = vst [vmem:[%s217 + $0x58] sm:$0xff] %v2035
      %2052 = vst [vmem:[%s217 + $0x60] sm:$0xff] %v2036
      %2053 = vst [vmem:[%s217 + $0x68] sm:$0xff] %v2037
      %2054 = vst [vmem:[%s217 + $0x70] sm:$0xff] %v2038
      %2055 = vst [vmem:[%s217 + $0x78] sm:$0xff] %v2039
      %p2056 = scmp.lt.s32.totalorder %s15, 1
      %s2057 = scalar_select %p2056, %s15, 1
      %s2058 = smul.addr %s2057, 16
      %s2059 = smul.addr %s2058, 8
      %s2060 = scalar_lea.vmem %s4, %s2059
      // Predicated region
      $region37: #{_node_gcn_forward.1} parent=35 // pred_check
        %p2061 = pneg %p127
      $region38: #{_node_gcn_forward.1} parent=35 // pred_check_branch
        %2063 = sbr.rel (%p2061) target = $region40
      $region39: #{_node_gcn_forward.1} parent=35 // pred_region
        _
      $region40: #{_node_gcn_forward.1} parent=35 // pred_fallthru
        _
    $region36: #{_node_gcn_forward.1} parent=5 // pred_fallthru
      _
    %p2064 = scmp.le.s32.totalorder 2, %s10
    // Predicated region
    $region41: #{_node_gcn_forward.1} parent=5 // pred_check
      %p2065 = pneg %p2064
    $region42: #{_node_gcn_forward.1} parent=5 // pred_check_branch
      %2067 = sbr.rel (%p2065) target = $region44
    $region43: #{_node_gcn_forward.1} parent=5 // pred_region
      %s2068 = ssub.s32 %s10, 2
      // Predicated region
      $region45: #{_node_gcn_forward.1} parent=43 // pred_check
        %p2069 = pneg %p133
      $region46: #{_node_gcn_forward.1} parent=43 // pred_check_branch
        %2071 = sbr.rel (%p2069) target = $region48
      $region47: #{_node_gcn_forward.1} parent=43 // pred_region
        %p2072 = scmp.lt.s32.totalorder %s16, 1
        %s2073 = scalar_select %p2072, %s16, 1
        %s2074 = smul.addr %s2073, 16
        %s2075 = smul.addr %s2074, 8
        %s2076 = scalar_lea.vmem %s4, %s2075
      $region48: #{_node_gcn_forward.1} parent=43 // pred_fallthru
        _
    $region44: #{_node_gcn_forward.1} parent=5 // pred_fallthru
      _
  $region6: #{_node_gcn_forward.1} parent=0 // loop_footer
    %s14 = sadd.s32 1, %s10
  $region7: #{_node_gcn_forward.1} parent=0 // loop_footer_branch
    %9 = sbr.rel target = $region3
  $region8: #{_node_gcn_forward.1} parent=0 // loop_exit
    _

</llo_original>
